<compile_context>
chip_gen: v7x
topology: tpu7x:2x2x1
jax: 0.10.0
libtpu: 0.0.40
codegen_flags: <defaults>
</compile_context>

<pallas_src>
import functools
import math

import jax
import jax.numpy as jnp
from jax.experimental import pallas as pl
from jax.experimental.pallas import tpu as pltpu


def _round_up(x, m):
    return ((x + m - 1) // m) * m


# ---------------------------------------------------------------------------
# Tap-offset derivation (mirrors TALayer.get_base_offset + deform-conv indexing)
# ---------------------------------------------------------------------------
def _branch_deltas(kh, kw, unit_size):
    assert unit_size >= kw
    K = kh * kw
    assert K % 2 == 1, "reference deform-conv keeps T only for odd kh*kw"
    pad = (K - 1) // 2
    center = (kh - 1) // 2
    return [j - pad + (unit_size - kw) * (j // kw - center) for j in range(K)]


# ---------------------------------------------------------------------------
# Fused BaseNet kernel: all MSTA layers + ReLUs for ONE batch element.
#   refs = (x_ref, w_0, b_0, ..., w_{L-1}, b_{L-1}, o_ref, act_ref)
#     x_ref  : (T, Cin_pad0)              bf16 channel-padded input slab
#     w_l    : (K*Cin_pad_l, Cout_pad_l)  bf16 per-layer tap-stacked weights
#     b_l    : (1, Cout_pad_l)            f32 branch-summed bias (zeros in padding)
#     o_ref  : (T, c_out_final)           final output
#     act_ref: (rows, C_pad_max)          bf16 VMEM scratch (activations + zero halo)
# ---------------------------------------------------------------------------
def basenet_kernel(*refs, deltas, T, halo, c_out_final, num_layers):
    L = num_layers
    K = len(deltas)
    x_ref = refs[0]
    o_ref = refs[1 + 2 * L]
    act_ref = refs[2 + 2 * L]

    # Zero the scratch once per grid step: halo rows and padded channels stay zero,
    # which implements both the deform-conv zero out-of-range sampling and the
    # lane-padding of channels.
    act_ref[...] = jnp.zeros_like(act_ref)
    cin0 = x_ref.shape[-1]
    act_ref[halo:halo + T, 0:cin0] = x_ref[...]

    for l in range(L):                          # static unroll over layers; all
        w_ref = refs[1 + 2 * l]                 # weights stay resident in VMEM
        b_ref = refs[2 + 2 * l]
        cin_p = w_ref.shape[0] // K
        cout_p = w_ref.shape[1]

        # Gather the K shifted windows into one (T, K*cin_p) slab and run a single
        # deep-contraction matmul on the MXU (bf16 x bf16 -> f32 accumulation).
        slab = jnp.concatenate(
            [act_ref[halo + d: halo + d + T, 0:cin_p] for d in deltas], axis=1)
        acc = jnp.dot(slab, w_ref[...], preferred_element_type=jnp.float32)
        acc = jnp.maximum(acc + b_ref[...], 0.0)            # bias + ReLU in f32

        if l + 1 < L:
            # Intermediate activation stays in VMEM (bf16), never touches HBM.
            act_ref[halo:halo + T, 0:cout_p] = acc.astype(act_ref.dtype)
        else:
            # Final layer: store the real (unpadded) channels, f32, no extra cast.
            o_ref[...] = acc[:, 0:c_out_final].astype(o_ref.dtype)


# ---------------------------------------------------------------------------
# Parameter construction (deterministic, matches TALayer.__init__ shapes/ranges)
# ---------------------------------------------------------------------------
def init_basenet_params(key, kernels, input_dim, dims):
    """Returns (deltas, layer_params); layer_params[l] = (w, b) with
       w: (K_total*Cin_pad_l, Cout_pad_l) bf16 (taps stacked along rows, zeros in
          padded channels) and b: (1, Cout_pad_l) f32 (branch-summed bias)."""
    deltas = []
    for (kh, kw, unit) in kernels:
        deltas += _branch_deltas(kh, kw, unit)
    K_total = len(deltas)

    layer_params = []
    for i, out_c in enumerate(dims):
        in_c = input_dim if i == 0 else dims[i - 1]
        cin_p = _round_up(in_c, 128)
        cout_p = _round_up(out_c, 128)
        w_pad = jnp.zeros((K_total, cin_p, cout_p), jnp.float32)
        b_sum = jnp.zeros((out_c,), jnp.float32)
        tap = 0
        for (kh, kw, unit) in kernels:
            K = kh * kw
            stdv = 1.0 / math.sqrt(in_c * K)        # reset_parameters / bias bound
            key, wk, bk = jax.random.split(key, 3)
            # torch weight (O, C, 1, K) stored here as (K, C, O)
            w = jax.random.uniform(wk, (K, in_c, out_c), jnp.float32, -stdv, stdv)
            b = jax.random.uniform(bk, (out_c,), jnp.float32, -stdv, stdv)
            w_pad = w_pad.at[tap:tap + K, :in_c, :out_c].set(w)
            b_sum = b_sum + b                        # fusion_type='add' sums biases
            tap += K
        b_pad = jnp.zeros((1, cout_p), jnp.float32).at[0, :out_c].set(b_sum)
        layer_params.append(
            (w_pad.reshape(K_total * cin_p, cout_p).astype(jnp.bfloat16), b_pad))
    return deltas, layer_params


# ---------------------------------------------------------------------------
# Wrapper: one pallas_call for the whole net
# ---------------------------------------------------------------------------
def basenet_forward(x_nct, deltas, layer_params, dims):
    """x_nct: (N, C, T) like the PyTorch module; returns (N, dims[-1], T)."""
    # TODO(synk): only fusion_type='add' (the default) is implemented.
    N, C, T = x_nct.shape
    K = len(deltas)
    L = len(layer_params)
    c_out_final = dims[-1]
    cin_p0 = layer_params[0][0].shape[0] // K
    c_pad_max = max([cin_p0] + [w.shape[1] for (w, _) in layer_params])

    # One-off layout change on the tiny net input: NCT -> NTC, bf16, channel-pad.
    # (All per-layer pads / transposes / activation HBM round trips are fused away.)
    x_in = jnp.transpose(x_nct, (0, 2, 1)).astype(jnp.bfloat16)
    x_in = jnp.pad(x_in, ((0, 0), (0, 0), (0, cin_p0 - C)))

    # Temporal halo handled inside VMEM: sublane-align the live rows.
    halo = _round_up(max(0, -min(deltas)), 8)
    rows = _round_up(halo + T + max(0, max(deltas)), 8)

    kernel = functools.partial(
        basenet_kernel, deltas=tuple(deltas), T=T, halo=halo,
        c_out_final=c_out_final, num_layers=L)

    in_specs = [pl.BlockSpec((None, T, cin_p0), lambda n: (n, 0, 0))]
    args = [x_in]
    for (w, b) in layer_params:
        in_specs.append(pl.BlockSpec(w.shape, lambda n: (0, 0)))   # resident weights
        in_specs.append(pl.BlockSpec(b.shape, lambda n: (0, 0)))
        args += [w, b]

    out_ntc = pl.pallas_call(
        kernel,
        out_shape=jax.ShapeDtypeStruct((N, T, c_out_final), x_nct.dtype),
        grid_spec=pltpu.PrefetchScalarGridSpec(
            num_scalar_prefetch=0,
            grid=(N,),                               # batch axis -> both TCs on v7x
            in_specs=in_specs,
            out_specs=pl.BlockSpec((None, T, c_out_final), lambda n: (n, 0, 0)),
            scratch_shapes=[pltpu.VMEM((rows, c_pad_max), jnp.bfloat16)],
        ),
        compiler_params=pltpu.CompilerParams(
            dimension_semantics=("parallel",),
            vmem_limit_bytes=32 * 1024 * 1024,       # > v5e 16MiB default,
        ),                                           # < v7x 64MiB physical
    )(*args)

    return jnp.transpose(out_ntc, (0, 2, 1))         # one-off NTC -> NCT on output


# ---------------------------------------------------------------------------
# Pure-JAX reference with identical bf16-input / f32-accumulation numerics
# ---------------------------------------------------------------------------
def basenet_reference(x_nct, deltas, layer_params, dims):
    K = len(deltas)
    x = jnp.transpose(x_nct, (0, 2, 1)).astype(jnp.bfloat16)   # (N, T, C)
    N, T, _ = x.shape
    out = None
    for (w, b) in layer_params:
        cin_p = w.shape[0] // K
        cout_p = w.shape[1]
        if x.shape[-1] < cin_p:
            x = jnp.pad(x, ((0, 0), (0, 0), (0, cin_p - x.shape[-1])))
        w3 = w.reshape(K, cin_p, cout_p)
        acc = jnp.zeros((N, T, cout_p), jnp.float32)
        for j, d in enumerate(deltas):
            shifted = jnp.zeros_like(x)
            dst_lo, dst_hi = max(0, -d), min(T, T - d)
            src_lo, src_hi = max(0, d), min(T, T + d)
            if dst_hi > dst_lo:
                shifted = shifted.at[:, dst_lo:dst_hi, :].set(x[:, src_lo:src_hi, :])
            acc = acc + jnp.einsum("ntc,co->nto", shifted, w3[j],
                                   preferred_element_type=jnp.float32)
        out = jnp.maximum(acc + b[None], 0.0)
        x = out.astype(jnp.bfloat16)
    out = out[:, :, :dims[-1]].astype(x_nct.dtype)
    return jnp.transpose(out, (0, 2, 1))


if __name__ == "__main__":
    # Small configuration consistent with BaseNet(kernels, input_dim, dims)
    kernels = [(1, 3, 4), (3, 3, 8)]   # (kh, kw, unit_size) per MSTA branch
    input_dim = 16
    dims = [32, 32]
    N, T = 2, 32

    key = jax.random.PRNGKey(0)
    key, xk = jax.random.split(key)
    x = jax.random.normal(xk, (N, input_dim, T), jnp.float32)   # (N, C, T)

    deltas, layer_params = init_basenet_params(key, kernels, input_dim, dims)
    out = jax.block_until_ready(basenet_forward(x, deltas, layer_params, dims))
    assert out.shape == (N, dims[-1], T), out.shape

    ref = jax.block_until_ready(basenet_reference(x, deltas, layer_params, dims))
    assert jnp.allclose(out, ref, atol=2e-2, rtol=2e-2), (
        float(jnp.max(jnp.abs(out - ref))))
    print("KERNEL_OK")
</pallas_src>

<mosaic_0001>
module attributes {stable_mosaic.version = 11 : i64} {
  func.func @basenet_kernel(%arg0: i32, %arg1: memref<1x32x128xbf16, #tpu.memory_space<vmem>>, %arg2: memref<1536x128xbf16, #tpu.memory_space<vmem>>, %arg3: memref<1x128xf32, #tpu.memory_space<vmem>>, %arg4: memref<1536x128xbf16, #tpu.memory_space<vmem>>, %arg5: memref<1x128xf32, #tpu.memory_space<vmem>>, %arg6: memref<1x32x32xf32, #tpu.memory_space<vmem>>, %arg7: memref<64x128xbf16, #tpu.memory_space<vmem>>) attributes {dimension_semantics = [#tpu.dimension_semantics<parallel>], iteration_bounds = array<i64: 2>, scalar_prefetch = 0 : i64, scratch_operands = 1 : i64, tpu.core_type = #tpu.core_type<tc>, window_params = [{transform_indices = @transform_0, window_bounds = array<i64: 1, 32, 128>}, {pipeline_mode = #tpu.pipeline_mode<synchronous>, transform_indices = @transform_1, window_bounds = array<i64: 1536, 128>}, {pipeline_mode = #tpu.pipeline_mode<synchronous>, transform_indices = @transform_2, window_bounds = array<i64: 1, 128>}, {pipeline_mode = #tpu.pipeline_mode<synchronous>, transform_indices = @transform_3, window_bounds = array<i64: 1536, 128>}, {pipeline_mode = #tpu.pipeline_mode<synchronous>, transform_indices = @transform_4, window_bounds = array<i64: 1, 128>}, {transform_indices = @transform_5, window_bounds = array<i64: 1, 32, 32>}]} {
    %cst = arith.constant 0.000000e+00 : bf16
    %0 = vector.broadcast %cst : bf16 to vector<64x128xbf16>
    %c0 = arith.constant 0 : index
    %c0_0 = arith.constant 0 : index
    %1 = vector.load %arg7[%c0, %c0_0] : memref<64x128xbf16, #tpu.memory_space<vmem>>, vector<64x128xbf16>
    tpu.vector_store %arg7[%c0, %c0_0], %0 {strides = array<i32>} : memref<64x128xbf16, #tpu.memory_space<vmem>>, vector<64x128xbf16>,
    %c0_1 = arith.constant 0 : index
    %c0_2 = arith.constant 0 : index
    %c0_3 = arith.constant 0 : index
    %2 = vector.load %arg1[%c0_1, %c0_2, %c0_3] : memref<1x32x128xbf16, #tpu.memory_space<vmem>>, vector<1x32x128xbf16>
    %3 = vector.shape_cast %2 : vector<1x32x128xbf16> to vector<32x128xbf16>
    %c16 = arith.constant 16 : index
    %c0_4 = arith.constant 0 : index
    %4 = vector.load %arg7[%c16, %c0_4] : memref<64x128xbf16, #tpu.memory_space<vmem>>, vector<32x128xbf16>
    tpu.vector_store %arg7[%c16, %c0_4], %3 {strides = array<i32>} : memref<64x128xbf16, #tpu.memory_space<vmem>>, vector<32x128xbf16>,
    %c15 = arith.constant 15 : index
    %c0_5 = arith.constant 0 : index
    %5 = vector.load %arg7[%c15, %c0_5] : memref<64x128xbf16, #tpu.memory_space<vmem>>, vector<32x128xbf16>
    %c16_6 = arith.constant 16 : index
    %c0_7 = arith.constant 0 : index
    %6 = vector.load %arg7[%c16_6, %c0_7] : memref<64x128xbf16, #tpu.memory_space<vmem>>, vector<32x128xbf16>
    %c17 = arith.constant 17 : index
    %c0_8 = arith.constant 0 : index
    %7 = vector.load %arg7[%c17, %c0_8] : memref<64x128xbf16, #tpu.memory_space<vmem>>, vector<32x128xbf16>
    %c7 = arith.constant 7 : index
    %c0_9 = arith.constant 0 : index
    %8 = vector.load %arg7[%c7, %c0_9] : memref<64x128xbf16, #tpu.memory_space<vmem>>, vector<32x128xbf16>
    %c8 = arith.constant 8 : index
    %c0_10 = arith.constant 0 : index
    %9 = vector.load %arg7[%c8, %c0_10] : memref<64x128xbf16, #tpu.memory_space<vmem>>, vector<32x128xbf16>
    %c9 = arith.constant 9 : index
    %c0_11 = arith.constant 0 : index
    %10 = vector.load %arg7[%c9, %c0_11] : memref<64x128xbf16, #tpu.memory_space<vmem>>, vector<32x128xbf16>
    %c15_12 = arith.constant 15 : index
    %c0_13 = arith.constant 0 : index
    %11 = vector.load %arg7[%c15_12, %c0_13] : memref<64x128xbf16, #tpu.memory_space<vmem>>, vector<32x128xbf16>
    %c16_14 = arith.constant 16 : index
    %c0_15 = arith.constant 0 : index
    %12 = vector.load %arg7[%c16_14, %c0_15] : memref<64x128xbf16, #tpu.memory_space<vmem>>, vector<32x128xbf16>
    %c17_16 = arith.constant 17 : index
    %c0_17 = arith.constant 0 : index
    %13 = vector.load %arg7[%c17_16, %c0_17] : memref<64x128xbf16, #tpu.memory_space<vmem>>, vector<32x128xbf16>
    %c23 = arith.constant 23 : index
    %c0_18 = arith.constant 0 : index
    %14 = vector.load %arg7[%c23, %c0_18] : memref<64x128xbf16, #tpu.memory_space<vmem>>, vector<32x128xbf16>
    %c24 = arith.constant 24 : index
    %c0_19 = arith.constant 0 : index
    %15 = vector.load %arg7[%c24, %c0_19] : memref<64x128xbf16, #tpu.memory_space<vmem>>, vector<32x128xbf16>
    %c25 = arith.constant 25 : index
    %c0_20 = arith.constant 0 : index
    %16 = vector.load %arg7[%c25, %c0_20] : memref<64x128xbf16, #tpu.memory_space<vmem>>, vector<32x128xbf16>
    %17 = tpu.concatenate %5, %6, %7, %8, %9, %10, %11, %12, %13, %14, %15, %16 in 1 : vector<32x128xbf16>, vector<32x128xbf16>, vector<32x128xbf16>, vector<32x128xbf16>, vector<32x128xbf16>, vector<32x128xbf16>, vector<32x128xbf16>, vector<32x128xbf16>, vector<32x128xbf16>, vector<32x128xbf16>, vector<32x128xbf16>, vector<32x128xbf16> -> vector<32x1536xbf16>
    %c0_21 = arith.constant 0 : index
    %c0_22 = arith.constant 0 : index
    %18 = vector.load %arg2[%c0_21, %c0_22] : memref<1536x128xbf16, #tpu.memory_space<vmem>>, vector<1536x128xbf16>
    %cst_23 = arith.constant dense<0.000000e+00> : vector<32x128xf32>
    %19 = tpu.matmul %17, %18, %cst_23 {dimension_numbers = #tpu.dot_dimension_numbers<[1], [0], [0], [1], [0, 0, 1, 1], [], []>} : vector<32x1536xbf16>, vector<1536x128xbf16>, vector<32x128xf32> -> vector<32x128xf32>
    %c0_24 = arith.constant 0 : index
    %c0_25 = arith.constant 0 : index
    %20 = vector.load %arg3[%c0_24, %c0_25] : memref<1x128xf32, #tpu.memory_space<vmem>>, vector<1x128xf32>
    %21 = vector.broadcast %20 : vector<1x128xf32> to vector<32x128xf32>
    %22 = arith.addf %19, %21 : vector<32x128xf32>
    %cst_26 = arith.constant 0.000000e+00 : f32
    %23 = vector.broadcast %cst_26 : f32 to vector<32x128xf32>
    %24 = arith.maximumf %22, %23 : vector<32x128xf32>
    %25 = arith.truncf %24 : vector<32x128xf32> to vector<32x128xbf16>
    %c16_27 = arith.constant 16 : index
    %c0_28 = arith.constant 0 : index
    %26 = vector.load %arg7[%c16_27, %c0_28] : memref<64x128xbf16, #tpu.memory_space<vmem>>, vector<32x128xbf16>
    tpu.vector_store %arg7[%c16_27, %c0_28], %25 {strides = array<i32>} : memref<64x128xbf16, #tpu.memory_space<vmem>>, vector<32x128xbf16>,
    %c15_29 = arith.constant 15 : index
    %c0_30 = arith.constant 0 : index
    %27 = vector.load %arg7[%c15_29, %c0_30] : memref<64x128xbf16, #tpu.memory_space<vmem>>, vector<32x128xbf16>
    %c16_31 = arith.constant 16 : index
    %c0_32 = arith.constant 0 : index
    %28 = vector.load %arg7[%c16_31, %c0_32] : memref<64x128xbf16, #tpu.memory_space<vmem>>, vector<32x128xbf16>
    %c17_33 = arith.constant 17 : index
    %c0_34 = arith.constant 0 : index
    %29 = vector.load %arg7[%c17_33, %c0_34] : memref<64x128xbf16, #tpu.memory_space<vmem>>, vector<32x128xbf16>
    %c7_35 = arith.constant 7 : index
    %c0_36 = arith.constant 0 : index
    %30 = vector.load %arg7[%c7_35, %c0_36] : memref<64x128xbf16, #tpu.memory_space<vmem>>, vector<32x128xbf16>
    %c8_37 = arith.constant 8 : index
    %c0_38 = arith.constant 0 : index
    %31 = vector.load %arg7[%c8_37, %c0_38] : memref<64x128xbf16, #tpu.memory_space<vmem>>, vector<32x128xbf16>
    %c9_39 = arith.constant 9 : index
    %c0_40 = arith.constant 0 : index
    %32 = vector.load %arg7[%c9_39, %c0_40] : memref<64x128xbf16, #tpu.memory_space<vmem>>, vector<32x128xbf16>
    %c15_41 = arith.constant 15 : index
    %c0_42 = arith.constant 0 : index
    %33 = vector.load %arg7[%c15_41, %c0_42] : memref<64x128xbf16, #tpu.memory_space<vmem>>, vector<32x128xbf16>
    %c16_43 = arith.constant 16 : index
    %c0_44 = arith.constant 0 : index
    %34 = vector.load %arg7[%c16_43, %c0_44] : memref<64x128xbf16, #tpu.memory_space<vmem>>, vector<32x128xbf16>
    %c17_45 = arith.constant 17 : index
    %c0_46 = arith.constant 0 : index
    %35 = vector.load %arg7[%c17_45, %c0_46] : memref<64x128xbf16, #tpu.memory_space<vmem>>, vector<32x128xbf16>
    %c23_47 = arith.constant 23 : index
    %c0_48 = arith.constant 0 : index
    %36 = vector.load %arg7[%c23_47, %c0_48] : memref<64x128xbf16, #tpu.memory_space<vmem>>, vector<32x128xbf16>
    %c24_49 = arith.constant 24 : index
    %c0_50 = arith.constant 0 : index
    %37 = vector.load %arg7[%c24_49, %c0_50] : memref<64x128xbf16, #tpu.memory_space<vmem>>, vector<32x128xbf16>
    %c25_51 = arith.constant 25 : index
    %c0_52 = arith.constant 0 : index
    %38 = vector.load %arg7[%c25_51, %c0_52] : memref<64x128xbf16, #tpu.memory_space<vmem>>, vector<32x128xbf16>
    %39 = tpu.concatenate %27, %28, %29, %30, %31, %32, %33, %34, %35, %36, %37, %38 in 1 : vector<32x128xbf16>, vector<32x128xbf16>, vector<32x128xbf16>, vector<32x128xbf16>, vector<32x128xbf16>, vector<32x128xbf16>, vector<32x128xbf16>, vector<32x128xbf16>, vector<32x128xbf16>, vector<32x128xbf16>, vector<32x128xbf16>, vector<32x128xbf16> -> vector<32x1536xbf16>
    %c0_53 = arith.constant 0 : index
    %c0_54 = arith.constant 0 : index
    %40 = vector.load %arg4[%c0_53, %c0_54] : memref<1536x128xbf16, #tpu.memory_space<vmem>>, vector<1536x128xbf16>
    %cst_55 = arith.constant dense<0.000000e+00> : vector<32x128xf32>
    %41 = tpu.matmul %39, %40, %cst_55 {dimension_numbers = #tpu.dot_dimension_numbers<[1], [0], [0], [1], [0, 0, 1, 1], [], []>} : vector<32x1536xbf16>, vector<1536x128xbf16>, vector<32x128xf32> -> vector<32x128xf32>
    %c0_56 = arith.constant 0 : index
    %c0_57 = arith.constant 0 : index
    %42 = vector.load %arg5[%c0_56, %c0_57] : memref<1x128xf32, #tpu.memory_space<vmem>>, vector<1x128xf32>
    %43 = vector.broadcast %42 : vector<1x128xf32> to vector<32x128xf32>
    %44 = arith.addf %41, %43 : vector<32x128xf32>
    %cst_58 = arith.constant 0.000000e+00 : f32
    %45 = vector.broadcast %cst_58 : f32 to vector<32x128xf32>
    %46 = arith.maximumf %44, %45 : vector<32x128xf32>
    %47 = vector.extract_strided_slice %46 {offsets = [0, 0], sizes = [32, 32], strides = [1, 1]} : vector<32x128xf32> to vector<32x32xf32>
    %c0_59 = arith.constant 0 : index
    %c0_60 = arith.constant 0 : index
    %c0_61 = arith.constant 0 : index
    %48 = vector.load %arg6[%c0_59, %c0_60, %c0_61] : memref<1x32x32xf32, #tpu.memory_space<vmem>>, vector<1x32x32xf32>
    %49 = vector.shape_cast %48 : vector<1x32x32xf32> to vector<32x32xf32>
    %50 = vector.shape_cast %47 : vector<32x32xf32> to vector<1x32x32xf32>
    tpu.vector_store %arg6[%c0_59, %c0_60, %c0_61], %50 {strides = array<i32>} : memref<1x32x32xf32, #tpu.memory_space<vmem>>, vector<1x32x32xf32>,
    return
  }
  func.func @transform_0(%arg0: i32) -> (i32, i32, i32) {
    %c0_i32 = arith.constant 0 : i32
    %c0_i32_0 = arith.constant 0 : i32
    %c0_i32_1 = arith.constant 0 : i32
    return %arg0, %c0_i32, %c0_i32_0 : i32, i32, i32
  }
  func.func @transform_1(%arg0: i32) -> (i32, i32) {
    %c0_i32 = arith.constant 0 : i32
    %c0_i32_0 = arith.constant 0 : i32
    %c0_i32_1 = arith.constant 0 : i32
    return %c0_i32, %c0_i32_0 : i32, i32
  }
  func.func @transform_2(%arg0: i32) -> (i32, i32) {
    %c0_i32 = arith.constant 0 : i32
    %c0_i32_0 = arith.constant 0 : i32
    %c0_i32_1 = arith.constant 0 : i32
    return %c0_i32, %c0_i32_0 : i32, i32
  }
  func.func @transform_3(%arg0: i32) -> (i32, i32) {
    %c0_i32 = arith.constant 0 : i32
    %c0_i32_0 = arith.constant 0 : i32
    %c0_i32_1 = arith.constant 0 : i32
    return %c0_i32, %c0_i32_0 : i32, i32
  }
  func.func @transform_4(%arg0: i32) -> (i32, i32) {
    %c0_i32 = arith.constant 0 : i32
    %c0_i32_0 = arith.constant 0 : i32
    %c0_i32_1 = arith.constant 0 : i32
    return %c0_i32, %c0_i32_0 : i32, i32
  }
  func.func @transform_5(%arg0: i32) -> (i32, i32, i32) {
    %c0_i32 = arith.constant 0 : i32
    %c0_i32_0 = arith.constant 0 : i32
    %c0_i32_1 = arith.constant 0 : i32
    return %arg0, %c0_i32, %c0_i32_0 : i32, i32, i32
  }
}

</mosaic_0001>

<llo_original>
// kernel: tpu_custom_call.1
$region0: #{tpu_custom_call.1}
  #allocation0 [shape = 'u32[]', space=smem, size = 0x4, offset = 0x4, fixed_abs, tag = 'smem constant byte address 0x4 - core index']
  #allocation1 [shape = 'u32[144,128]{1,0:T(1,128)}', space=vmem, size = 0x12000, scoped, tag = 'internal scratch']
  #allocation2 [shape = 'bf16[64,128]{1,0:T(16,128)(2,1)}', space=vmem, size = 0x4000, scoped, tag = 'scratch operand']
  %s0 = inlined_call_operand.hbm [shape: bf16[2,32,128], index: 0, kind: input, shape index: {}]
  %s1 = inlined_call_operand.hbm [shape: bf16[1536,128], index: 1, kind: input, shape index: {}]
  %s2 = inlined_call_operand.vmem [shape: f32[1,128], index: 2, kind: input, shape index: {}]
  %s3 = inlined_call_operand.hbm [shape: bf16[1536,128], index: 3, kind: input, shape index: {}]
  %s4 = inlined_call_operand.vmem [shape: f32[1,128], index: 4, kind: input, shape index: {}]
  %s5 = inlined_call_operand.hbm [shape: f32[2,32,32], index: 5, kind: output, shape index: {}]
  %s6 = sld [smem:[#allocation0]]
  $region65: #{tpu_custom_call.1} parent=0
    _
  %s8 = ssub.s32 1, %s6
  %s9 = scalar_select 0, %s8, %s6
  $region1: #{tpu_custom_call.1} parent=0
    #allocation3 [shape = 'u8[16384]{0}', space=vmem, size = 0x4000, scoped, tag = 'input window, operand 0']
    #allocation4 [shape = 's32[2]{0}', space=sflag, size = 0x8, scoped, tag = 'scoped memory for tpu_custom_call.1']
    #allocation5 [shape = 's32[2]{0}', space=sflag, size = 0x8, scoped, tag = 'scoped memory for tpu_custom_call.1']
    #allocation6 [shape = 'u8[393216]{0}', space=vmem, size = 0x60000, scoped, tag = 'input window, operand 1, single buffered']
    #allocation7 [shape = 's32[1]{0}', space=sflag, size = 0x4, scoped, tag = 'scoped memory for tpu_custom_call.1']
    #allocation8 [shape = 'u8[393216]{0}', space=vmem, size = 0x60000, scoped, tag = 'input window, operand 3, single buffered']
    #allocation9 [shape = 'u8[32768]{0}', space=vmem, size = 0x8000, scoped, tag = 'output window, operand 0']
    %10 = vsyncpa [#allocation4], 0
    %s11 = scalar_lea.sflag [#allocation4], 1
    %12 = vsyncpa %s11, 0
    %13 = vsyncpa [#allocation7], 0
    %14 = vsyncpa [#allocation5], 0
    %s15 = scalar_lea.sflag [#allocation5], 1
    %16 = vsyncpa %s15, 0
    loop: start=0, step=1, limit=4
    $region2: #{tpu_custom_call.1} parent=1 // loop_pre_header
      _
    $region3: #{tpu_custom_call.1} parent=1 // loop_header
      %s18 = sphi 0, %s22
      %p19 = scmp.ge.s32.totalorder %s18, 4
      %s28 = sphi 0, %s30
      %s31 = sphi 0, %s28
      %s32 = sphi 0, %s31
      %s48 = sphi 0, %s32
      %s52 = sphi 0, %s52
      %s54 = sphi 0, %s52
      %s55 = sphi 0, %s54
      %s69 = sphi 0, %s55
      %s73 = sphi 0, %s73
      %s75 = sphi 0, %s73
      %s76 = sphi 0, %s75
      %s90 = sphi 0, %s76
      %s94 = sphi 0, %s94
      %s96 = sphi 0, %s94
      %s97 = sphi 0, %s96
      %s111 = sphi 0, %s97
      %s115 = sphi 0, %s115
      %s117 = sphi 0, %s115
      %s118 = sphi 0, %s117
      %s132 = sphi 0, %s118
      %s138 = sphi 0, %s140
      %s141 = sphi 0, %s138
      %s142 = sphi 0, %s141
      %s158 = sphi 0, %s142
    $region4: #{tpu_custom_call.1} parent=1 // loop_header_branch
      %21 = sbr.rel (%p19) target = $region8
    $region5: #{tpu_custom_call.1} parent=1 // loop_body
      %s23 = ssub.s32 %s18, 1
      %s24 = ssub.s32 %s18, 2
      %s25 = sadd.s32 %s18, 1
      %s26 = ssub.s32 %s18, %s25
      %p27 = scmp.eq.s32.totalorder %s26, 0
      %s29 = sadd.s32 %s28, 1
      %s30 = scalar_select %p27, %s28, %s29
      %p33 = pneg %p27
      %p34 = scmp.eq.s32.totalorder %s18, 1
      %p35 = por %p33, %p34
      %p36 = scmp.ne.s32.totalorder %s28, %s31
      %p37 = scmp.eq.s32.totalorder %s18, 0
      %p38 = por %p36, %p37
      %p39 = scmp.ne.s32.totalorder %s28, %s31
      %p40 = scmp.eq.s32.totalorder %s23, 1
      %p41 = por %p39, %p40
      %p42 = scmp.ne.s32.totalorder %s31, %s32
      %p43 = scmp.eq.s32.totalorder %s23, 0
      %p44 = por %p42, %p43
      %p45 = scmp.ne.s32.totalorder %s31, %s32
      %p46 = scmp.eq.s32.totalorder %s24, 1
      %p47 = por %p45, %p46
      %p49 = scmp.ne.s32.totalorder %s32, %s48
      %p50 = scmp.eq.s32.totalorder %s24, 0
      %p51 = por %p49, %p50
      %s53 = sadd.s32 %s52, 1
      %p56 = scmp.eq.s32.totalorder %s18, 1
      %p57 = scmp.ne.s32.totalorder %s52, %s54
      %p58 = scmp.eq.s32.totalorder %s18, 0
      %p59 = por %p57, %p58
      %p60 = scmp.ne.s32.totalorder %s52, %s54
      %p61 = scmp.eq.s32.totalorder %s23, 1
      %p62 = por %p60, %p61
      %p63 = scmp.ne.s32.totalorder %s54, %s55
      %p64 = scmp.eq.s32.totalorder %s23, 0
      %p65 = por %p63, %p64
      %p66 = scmp.ne.s32.totalorder %s54, %s55
      %p67 = scmp.eq.s32.totalorder %s24, 1
      %p68 = por %p66, %p67
      %p70 = scmp.ne.s32.totalorder %s55, %s69
      %p71 = scmp.eq.s32.totalorder %s24, 0
      %p72 = por %p70, %p71
      %s74 = sadd.s32 %s73, 1
      %p77 = scmp.eq.s32.totalorder %s18, 1
      %p78 = scmp.ne.s32.totalorder %s73, %s75
      %p79 = scmp.eq.s32.totalorder %s18, 0
      %p80 = por %p78, %p79
      %p81 = scmp.ne.s32.totalorder %s73, %s75
      %p82 = scmp.eq.s32.totalorder %s23, 1
      %p83 = por %p81, %p82
      %p84 = scmp.ne.s32.totalorder %s75, %s76
      %p85 = scmp.eq.s32.totalorder %s23, 0
      %p86 = por %p84, %p85
      %p87 = scmp.ne.s32.totalorder %s75, %s76
      %p88 = scmp.eq.s32.totalorder %s24, 1
      %p89 = por %p87, %p88
      %p91 = scmp.ne.s32.totalorder %s76, %s90
      %p92 = scmp.eq.s32.totalorder %s24, 0
      %p93 = por %p91, %p92
      %s95 = sadd.s32 %s94, 1
      %p98 = scmp.eq.s32.totalorder %s18, 1
      %p99 = scmp.ne.s32.totalorder %s94, %s96
      %p100 = scmp.eq.s32.totalorder %s18, 0
      %p101 = por %p99, %p100
      %p102 = scmp.ne.s32.totalorder %s94, %s96
      %p103 = scmp.eq.s32.totalorder %s23, 1
      %p104 = por %p102, %p103
      %p105 = scmp.ne.s32.totalorder %s96, %s97
      %p106 = scmp.eq.s32.totalorder %s23, 0
      %p107 = por %p105, %p106
      %p108 = scmp.ne.s32.totalorder %s96, %s97
      %p109 = scmp.eq.s32.totalorder %s24, 1
      %p110 = por %p108, %p109
      %p112 = scmp.ne.s32.totalorder %s97, %s111
      %p113 = scmp.eq.s32.totalorder %s24, 0
      %p114 = por %p112, %p113
      %s116 = sadd.s32 %s115, 1
      %p119 = scmp.eq.s32.totalorder %s18, 1
      %p120 = scmp.ne.s32.totalorder %s115, %s117
      %p121 = scmp.eq.s32.totalorder %s18, 0
      %p122 = por %p120, %p121
      %p123 = scmp.ne.s32.totalorder %s115, %s117
      %p124 = scmp.eq.s32.totalorder %s23, 1
      %p125 = por %p123, %p124
      %p126 = scmp.ne.s32.totalorder %s117, %s118
      %p127 = scmp.eq.s32.totalorder %s23, 0
      %p128 = por %p126, %p127
      %p129 = scmp.ne.s32.totalorder %s117, %s118
      %p130 = scmp.eq.s32.totalorder %s24, 1
      %p131 = por %p129, %p130
      %p133 = scmp.ne.s32.totalorder %s118, %s132
      %p134 = scmp.eq.s32.totalorder %s24, 0
      %p135 = por %p133, %p134
      %s136 = ssub.s32 %s18, %s25
      %p137 = scmp.eq.s32.totalorder %s136, 0
      %s139 = sadd.s32 %s138, 1
      %s140 = scalar_select %p137, %s138, %s139
      %p143 = pneg %p137
      %p144 = scmp.eq.s32.totalorder %s18, 1
      %p145 = por %p143, %p144
      %p146 = scmp.ne.s32.totalorder %s138, %s141
      %p147 = scmp.eq.s32.totalorder %s18, 0
      %p148 = por %p146, %p147
      %p149 = scmp.ne.s32.totalorder %s138, %s141
      %p150 = scmp.eq.s32.totalorder %s23, 1
      %p151 = por %p149, %p150
      %p152 = scmp.ne.s32.totalorder %s141, %s142
      %p153 = scmp.eq.s32.totalorder %s23, 0
      %p154 = por %p152, %p153
      %p155 = scmp.ne.s32.totalorder %s141, %s142
      %p156 = scmp.eq.s32.totalorder %s24, 1
      %p157 = por %p155, %p156
      %p159 = scmp.ne.s32.totalorder %s142, %s158
      %p160 = scmp.eq.s32.totalorder %s24, 0
      %p161 = por %p159, %p160
      %p162 = scmp.le.s32.totalorder 1, %s18
      %p163 = scmp.lt.s32.totalorder %s18, 3
      %p164 = pnand %p162, %p163
      %p165 = pneg %p164
      // Predicated region
      $region9: #{tpu_custom_call.1} parent=5 // pred_check
        _
      $region10: #{tpu_custom_call.1} parent=5 // pred_check_branch
        %167 = sbr.rel (%p164) target = $region12
      $region11: #{tpu_custom_call.1} parent=5 // pred_region
        %s168 = ssub.s32 %s18, 1
        // Predicated region
        $region13: #{tpu_custom_call.1} parent=11 // pred_check
          %p169 = pneg %p65
        $region14: #{tpu_custom_call.1} parent=11 // pred_check_branch
          %171 = sbr.rel (%p169) target = $region16
        $region15: #{tpu_custom_call.1} parent=11 // pred_region
          %s173 = ssub.s32 12288, 12288
          %174 = vsyncadd [#allocation7], %s173
          %s175 = sshll.u32 [#allocation6], 4
          %s176 = int_to_ptr.vmem [resolvable:$true] %s175
          %181 = dma.hbm_to_vmem [thread:$0]  %s1, 12288, %s176, [#allocation7], 64, 64, 4
        $region16: #{tpu_custom_call.1} parent=11 // pred_fallthru
          _
        // Predicated region
        $region17: #{tpu_custom_call.1} parent=11 // pred_check
          %p182 = pneg %p86
        $region18: #{tpu_custom_call.1} parent=11 // pred_check_branch
          %184 = sbr.rel (%p182) target = $region20
        $region19: #{tpu_custom_call.1} parent=11 // pred_region
          _
        $region20: #{tpu_custom_call.1} parent=11 // pred_fallthru
          _
        // Predicated region
        $region21: #{tpu_custom_call.1} parent=11 // pred_check
          %p185 = pneg %p107
        $region22: #{tpu_custom_call.1} parent=11 // pred_check_branch
          %187 = sbr.rel (%p185) target = $region24
        $region23: #{tpu_custom_call.1} parent=11 // pred_region
          %s189 = ssub.s32 12288, 12288
          %190 = vsyncadd [#allocation7], %s189
          %s191 = sshll.u32 [#allocation8], 4
          %s192 = int_to_ptr.vmem [resolvable:$true] %s191
          %197 = dma.hbm_to_vmem [thread:$0]  %s3, 12288, %s192, [#allocation7], 64, 64, 4
        $region24: #{tpu_custom_call.1} parent=11 // pred_fallthru
          _
        // Predicated region
        $region25: #{tpu_custom_call.1} parent=11 // pred_check
          %p198 = pneg %p128
        $region26: #{tpu_custom_call.1} parent=11 // pred_check_branch
          %200 = sbr.rel (%p198) target = $region28
        $region27: #{tpu_custom_call.1} parent=11 // pred_region
          _
        $region28: #{tpu_custom_call.1} parent=11 // pred_fallthru
          _
      $region12: #{tpu_custom_call.1} parent=5 // pred_fallthru
        _
      %p201 = scmp.lt.s32.totalorder %s18, 2
      // Predicated region
      $region29: #{tpu_custom_call.1} parent=5 // pred_check
        %p202 = pneg %p201
      $region30: #{tpu_custom_call.1} parent=5 // pred_check_branch
        %204 = sbr.rel (%p202) target = $region32
      $region31: #{tpu_custom_call.1} parent=5 // pred_region
        // Predicated region
        $region33: #{tpu_custom_call.1} parent=31 // pred_check
          %p205 = pneg %p38
        $region34: #{tpu_custom_call.1} parent=31 // pred_check_branch
          %207 = sbr.rel (%p205) target = $region36
        $region35: #{tpu_custom_call.1} parent=31 // pred_region
          %s208 = sand.u32 %s28, 1
          %s209 = scalar_lea.sflag [#allocation4], %s208
          %s210 = sand.u32 %s28, 1
          %s211 = smul.addr %s210, 16
          %s212 = scalar_lea.vmem [#allocation3], %s211
          %s214 = ssub.s32 256, 256
          %215 = vsyncadd %s209, %s214
          %s216 = smul.addr %s18, 4
          %s217 = smul.addr %s216, 64
          %s218 = scalar_lea.hbm %s0, %s217
          %s219 = sshll.u32 %s212, 4
          %s220 = int_to_ptr.vmem [resolvable:$true] %s219
          %225 = dma.hbm_to_vmem [thread:$0]  %s218, 256, %s220, %s209, 64, 64, 4
        $region36: #{tpu_custom_call.1} parent=31 // pred_fallthru
          _
      $region32: #{tpu_custom_call.1} parent=5 // pred_fallthru
        _
      %p226 = scmp.le.s32.totalorder 1, %s18
      %p227 = scmp.lt.s32.totalorder %s18, 3
      %p228 = pnand %p226, %p227
      %p229 = pneg %p228
      // Predicated region
      $region37: #{tpu_custom_call.1} parent=5 // pred_check
        _
      $region38: #{tpu_custom_call.1} parent=5 // pred_check_branch
        %231 = sbr.rel (%p228) target = $region40
      $region39: #{tpu_custom_call.1} parent=5 // pred_region
        %s232 = ssub.s32 %s18, 1
        %s233 = sand.u32 %s31, 1
        %s234 = scalar_lea.sflag [#allocation4], %s233
        %s235 = sand.u32 %s31, 1
        %s236 = smul.addr %s235, 16
        %s237 = scalar_lea.vmem [#allocation3], %s236
        // Predicated region
        $region41: #{tpu_custom_call.1} parent=39 // pred_check
          %p238 = pneg %p44
        $region42: #{tpu_custom_call.1} parent=39 // pred_check_branch
          %240 = sbr.rel (%p238) target = $region44
        $region43: #{tpu_custom_call.1} parent=39 // pred_region
          %241 = dma.done %s234, 256
        $region44: #{tpu_custom_call.1} parent=39 // pred_fallthru
          _
        // Predicated region
        $region45: #{tpu_custom_call.1} parent=39 // pred_check
          %p242 = pneg %p65
        $region46: #{tpu_custom_call.1} parent=39 // pred_check_branch
          %244 = sbr.rel (%p242) target = $region48
        $region47: #{tpu_custom_call.1} parent=39 // pred_region
          %245 = dma.done [#allocation7], 12288
        $region48: #{tpu_custom_call.1} parent=39 // pred_fallthru
          _
        // Predicated region
        $region49: #{tpu_custom_call.1} parent=39 // pred_check
          %p246 = pneg %p107
        $region50: #{tpu_custom_call.1} parent=39 // pred_check_branch
          %248 = sbr.rel (%p246) target = $region52
        $region51: #{tpu_custom_call.1} parent=39 // pred_region
          %249 = dma.done [#allocation7], 12288
        $region52: #{tpu_custom_call.1} parent=39 // pred_fallthru
          _
        %s250 = sand.u32 %s31, 1
        %s251 = scalar_lea.sflag [#allocation4], %s250
        %s252 = sand.u32 %s31, 1
        %s253 = smul.addr %s252, 16
        %s254 = scalar_lea.vmem [#allocation3], %s253
        %p255 = pneg %p44
        %p256 = pneg %p41
        %p257 = pneg %p65
        %p258 = pneg %p62
        %p259 = pneg %p86
        %p260 = pneg %p83
        %p261 = pneg %p107
        %p262 = pneg %p104
        %p263 = pneg %p128
        %p264 = pneg %p125
        %p265 = pneg %p154
        %p266 = pneg %p151
        %s267 = sand.u32 %s141, 1
        %s268 = scalar_lea.sflag [#allocation5], %s267
        %s269 = sand.u32 %s141, 1
        %s270 = smul.addr %s269, 32
        %s271 = scalar_lea.vmem [#allocation9], %s270
        %273 = vst [vmem:[#allocation2] sm:$0xff] 0
        %274 = vst [vmem:[#allocation2 + $0x8] sm:$0xff] 0
        %275 = vst [vmem:[#allocation2 + $0x10] sm:$0xff] 0
        %276 = vst [vmem:[#allocation2 + $0x18] sm:$0xff] 0
        %v277 = vld [vmem:[%s237] sm:$0xf]
        %v278 = vld [vmem:[%s237 + $0x4] sm:$0xf]
        %v279 = vld [vmem:[%s237 + $0x8] sm:$0xf]
        %v280 = vld [vmem:[%s237 + $0xc] sm:$0xf]
        %v285 = vunpack.c.l.b16 %v277
        %v286 = vunpack.c.l.b16 %v278
        %v287 = vunpack.c.l.b16 %v279
        %v288 = vunpack.c.l.b16 %v280
        %v289 = vpack.c.b16 %v286, %v285
        %v290 = vpack.c.b16 %v288, %v287
        %293 = vst [vmem:[#allocation2 + $0x8] sm:$0xff] %v289
        %294 = vst [vmem:[#allocation2 + $0x10] sm:$0xff] %v290
        %v295 = vld [vmem:[#allocation2] sm:$0x80]
        %v296 = vld [vmem:[#allocation2 + $0x8] sm:$0xff]
        %v297 = vld [vmem:[#allocation2 + $0x10] sm:$0xff]
        %v298 = vld [vmem:[#allocation2 + $0x8] sm:$0xff]
        %v299 = vld [vmem:[#allocation2 + $0x10] sm:$0xff]
        %v300 = vld [vmem:[#allocation2 + $0x18] sm:$0x1]
        %v301 = vld [vmem:[#allocation2] sm:$0xf8]
        %v302 = vld [vmem:[#allocation2 + $0x10] sm:$0xf]
        %v303 = vld [vmem:[#allocation2] sm:$0xf0]
        %v304 = vld [vmem:[#allocation2 + $0x10] sm:$0x1f]
        %v305 = vld [vmem:[#allocation2 + $0x8] sm:$0xf8]
        %v306 = vld [vmem:[#allocation2 + $0x18] sm:$0xf]
        %v307 = vld [vmem:[#allocation2 + $0x8] sm:$0xf0]
        %v308 = vld [vmem:[#allocation2 + $0x18] sm:$0x1f]
        %vm309 = vsmask.f32 7424
        %v311 = vshll.u32 %v296, 16
        %v313 = vrot.slane %v311, 1
        %v314 = vshrl.u32 %v296, 16
        %v316 = vor.u32 %v314, %v313
        %v318 = vshll.u32 %v297, 16
        %v320 = vrot.slane %v318, 1
        %v321 = vsel %vm309, %v316, %v320
        %v322 = vshrl.u32 %v297, 16
        %v324 = vor.u32 %v322, %v320
        %vm328 = vcmask 1046528
        %v329 = vrot.slane %v298, 1
        %v330 = vrot.slane %v299, 1
        %v331 = vsel %vm328, %v329, %v330
        %v332 = vrot.slane %v300, 1
        %v333 = vsel %vm328, %v330, %v332
        %vm337 = vcmask 1043456
        %v338 = vrot.slane %v301, 4
        %v339 = vrot.slane %v296, 4
        %v340 = vsel %vm337, %v338, %v339
        %v341 = vrot.slane %v302, 4
        %v342 = vsel %vm337, %v339, %v341
        %vm343 = vsmask.f32 3328
        %v345 = vshll.u32 %v303, 16
        %v347 = vrot.slane %v345, 5
        %v348 = vshrl.u32 %v303, 16
        %v350 = vrot.slane %v348, 4
        %v351 = vor.u32 %v350, %v347
        %v352 = vrot.slane %v314, 4
        %v353 = vrot.slane %v311, 5
        %v354 = vor.u32 %v352, %v353
        %v355 = vsel %vm343, %v351, %v354
        %v357 = vshrl.u32 %v302, 16
        %v359 = vrot.slane %v357, 4
        %v360 = vshll.u32 %v302, 16
        %v362 = vrot.slane %v360, 5
        %v363 = vor.u32 %v359, %v362
        %v364 = vsel %vm343, %v354, %v363
        %vm367 = vcmask 1042432
        %v368 = vrot.slane %v303, 5
        %v369 = vrot.slane %v296, 5
        %v370 = vsel %vm367, %v368, %v369
        %v371 = vrot.slane %v304, 5
        %v372 = vsel %vm367, %v369, %v371
        %v375 = vrot.slane %v305, 4
        %v376 = vrot.slane %v299, 4
        %v377 = vsel %vm337, %v375, %v376
        %v378 = vrot.slane %v306, 4
        %v379 = vsel %vm337, %v376, %v378
        %v381 = vshll.u32 %v307, 16
        %v383 = vrot.slane %v381, 5
        %v384 = vshrl.u32 %v307, 16
        %v386 = vrot.slane %v384, 4
        %v387 = vor.u32 %v386, %v383
        %v389 = vshrl.u32 %v299, 16
        %v391 = vrot.slane %v389, 4
        %v392 = vshll.u32 %v299, 16
        %v394 = vrot.slane %v392, 5
        %v395 = vor.u32 %v391, %v394
        %v396 = vsel %vm343, %v387, %v395
        %v398 = vshrl.u32 %v306, 16
        %v400 = vrot.slane %v398, 4
        %v401 = vshll.u32 %v306, 16
        %v403 = vrot.slane %v401, 5
        %v404 = vor.u32 %v400, %v403
        %v405 = vsel %vm343, %v395, %v404
        %v408 = vrot.slane %v307, 5
        %v409 = vrot.slane %v299, 5
        %v410 = vsel %vm367, %v408, %v409
        %v411 = vrot.slane %v308, 5
        %v412 = vsel %vm367, %v409, %v411
        %v413 = vld [vmem:[#allocation6] sm:$0xf]
        %v414 = vld [vmem:[#allocation6 + $0x4] sm:$0xf]
        %v415 = vld [vmem:[#allocation6 + $0x8] sm:$0xf]
        %v416 = vld [vmem:[#allocation6 + $0xc] sm:$0xf]
        %v417 = vld [vmem:[#allocation6 + $0x10] sm:$0xf]
        %v418 = vld [vmem:[#allocation6 + $0x14] sm:$0xf]
        %v419 = vld [vmem:[#allocation6 + $0x18] sm:$0xf]
        %v420 = vld [vmem:[#allocation6 + $0x1c] sm:$0xf]
        %v421 = vld [vmem:[#allocation6 + $0x20] sm:$0xf]
        %v422 = vld [vmem:[#allocation6 + $0x24] sm:$0xf]
        %v423 = vld [vmem:[#allocation6 + $0x28] sm:$0xf]
        %v424 = vld [vmem:[#allocation6 + $0x2c] sm:$0xf]
        %v425 = vld [vmem:[#allocation6 + $0x30] sm:$0xf]
        %v426 = vld [vmem:[#allocation6 + $0x34] sm:$0xf]
        %v427 = vld [vmem:[#allocation6 + $0x38] sm:$0xf]
        %v428 = vld [vmem:[#allocation6 + $0x3c] sm:$0xf]
        %v429 = vld [vmem:[#allocation6 + $0x40] sm:$0xf]
        %v430 = vld [vmem:[#allocation6 + $0x44] sm:$0xf]
        %v431 = vld [vmem:[#allocation6 + $0x48] sm:$0xf]
        %v432 = vld [vmem:[#allocation6 + $0x4c] sm:$0xf]
        %v433 = vld [vmem:[#allocation6 + $0x50] sm:$0xf]
        %v434 = vld [vmem:[#allocation6 + $0x54] sm:$0xf]
        %v435 = vld [vmem:[#allocation6 + $0x58] sm:$0xf]
        %v436 = vld [vmem:[#allocation6 + $0x5c] sm:$0xf]
        %v437 = vld [vmem:[#allocation6 + $0x60] sm:$0xf]
        %v438 = vld [vmem:[#allocation6 + $0x64] sm:$0xf]
        %v439 = vld [vmem:[#allocation6 + $0x68] sm:$0xf]
        %v440 = vld [vmem:[#allocation6 + $0x6c] sm:$0xf]
        %v441 = vld [vmem:[#allocation6 + $0x70] sm:$0xf]
        %v442 = vld [vmem:[#allocation6 + $0x74] sm:$0xf]
        %v443 = vld [vmem:[#allocation6 + $0x78] sm:$0xf]
        %v444 = vld [vmem:[#allocation6 + $0x7c] sm:$0xf]
        %v445 = vld [vmem:[#allocation6 + $0x80] sm:$0xf]
        %v446 = vld [vmem:[#allocation6 + $0x84] sm:$0xf]
        %v447 = vld [vmem:[#allocation6 + $0x88] sm:$0xf]
        %v448 = vld [vmem:[#allocation6 + $0x8c] sm:$0xf]
        %v449 = vld [vmem:[#allocation6 + $0x90] sm:$0xf]
        %v450 = vld [vmem:[#allocation6 + $0x94] sm:$0xf]
        %v451 = vld [vmem:[#allocation6 + $0x98] sm:$0xf]
        %v452 = vld [vmem:[#allocation6 + $0x9c] sm:$0xf]
        %v453 = vld [vmem:[#allocation6 + $0xa0] sm:$0xf]
        %v454 = vld [vmem:[#allocation6 + $0xa4] sm:$0xf]
        %v455 = vld [vmem:[#allocation6 + $0xa8] sm:$0xf]
        %v456 = vld [vmem:[#allocation6 + $0xac] sm:$0xf]
        %v457 = vld [vmem:[#allocation6 + $0xb0] sm:$0xf]
        %v458 = vld [vmem:[#allocation6 + $0xb4] sm:$0xf]
        %v459 = vld [vmem:[#allocation6 + $0xb8] sm:$0xf]
        %v460 = vld [vmem:[#allocation6 + $0xbc] sm:$0xf]
        %v461 = vld [vmem:[#allocation6 + $0xc0] sm:$0xf]
        %v462 = vld [vmem:[#allocation6 + $0xc4] sm:$0xf]
        %v463 = vld [vmem:[#allocation6 + $0xc8] sm:$0xf]
        %v464 = vld [vmem:[#allocation6 + $0xcc] sm:$0xf]
        %v465 = vld [vmem:[#allocation6 + $0xd0] sm:$0xf]
        %v466 = vld [vmem:[#allocation6 + $0xd4] sm:$0xf]
        %v467 = vld [vmem:[#allocation6 + $0xd8] sm:$0xf]
        %v468 = vld [vmem:[#allocation6 + $0xdc] sm:$0xf]
        %v469 = vld [vmem:[#allocation6 + $0xe0] sm:$0xf]
        %v470 = vld [vmem:[#allocation6 + $0xe4] sm:$0xf]
        %v471 = vld [vmem:[#allocation6 + $0xe8] sm:$0xf]
        %v472 = vld [vmem:[#allocation6 + $0xec] sm:$0xf]
        %v473 = vld [vmem:[#allocation6 + $0xf0] sm:$0xf]
        %v474 = vld [vmem:[#allocation6 + $0xf4] sm:$0xf]
        %v475 = vld [vmem:[#allocation6 + $0xf8] sm:$0xf]
        %v476 = vld [vmem:[#allocation6 + $0xfc] sm:$0xf]
        %v477 = vld [vmem:[#allocation6 + $0x100] sm:$0xf]
        %v478 = vld [vmem:[#allocation6 + $0x104] sm:$0xf]
        %v479 = vld [vmem:[#allocation6 + $0x108] sm:$0xf]
        %v480 = vld [vmem:[#allocation6 + $0x10c] sm:$0xf]
        %v481 = vld [vmem:[#allocation6 + $0x110] sm:$0xf]
        %v482 = vld [vmem:[#allocation6 + $0x114] sm:$0xf]
        %v483 = vld [vmem:[#allocation6 + $0x118] sm:$0xf]
        %v484 = vld [vmem:[#allocation6 + $0x11c] sm:$0xf]
        %v485 = vld [vmem:[#allocation6 + $0x120] sm:$0xf]
        %v486 = vld [vmem:[#allocation6 + $0x124] sm:$0xf]
        %v487 = vld [vmem:[#allocation6 + $0x128] sm:$0xf]
        %v488 = vld [vmem:[#allocation6 + $0x12c] sm:$0xf]
        %v489 = vld [vmem:[#allocation6 + $0x130] sm:$0xf]
        %v490 = vld [vmem:[#allocation6 + $0x134] sm:$0xf]
        %v491 = vld [vmem:[#allocation6 + $0x138] sm:$0xf]
        %v492 = vld [vmem:[#allocation6 + $0x13c] sm:$0xf]
        %v493 = vld [vmem:[#allocation6 + $0x140] sm:$0xf]
        %v494 = vld [vmem:[#allocation6 + $0x144] sm:$0xf]
        %v495 = vld [vmem:[#allocation6 + $0x148] sm:$0xf]
        %v496 = vld [vmem:[#allocation6 + $0x14c] sm:$0xf]
        %v497 = vld [vmem:[#allocation6 + $0x150] sm:$0xf]
        %v498 = vld [vmem:[#allocation6 + $0x154] sm:$0xf]
        %v499 = vld [vmem:[#allocation6 + $0x158] sm:$0xf]
        %v500 = vld [vmem:[#allocation6 + $0x15c] sm:$0xf]
        %v501 = vld [vmem:[#allocation6 + $0x160] sm:$0xf]
        %v502 = vld [vmem:[#allocation6 + $0x164] sm:$0xf]
        %v503 = vld [vmem:[#allocation6 + $0x168] sm:$0xf]
        %v504 = vld [vmem:[#allocation6 + $0x16c] sm:$0xf]
        %v505 = vld [vmem:[#allocation6 + $0x170] sm:$0xf]
        %v506 = vld [vmem:[#allocation6 + $0x174] sm:$0xf]
        %v507 = vld [vmem:[#allocation6 + $0x178] sm:$0xf]
        %v508 = vld [vmem:[#allocation6 + $0x17c] sm:$0xf]
        %v509 = vld [vmem:[#allocation6 + $0x180] sm:$0xf]
        %v510 = vld [vmem:[#allocation6 + $0x184] sm:$0xf]
        %v511 = vld [vmem:[#allocation6 + $0x188] sm:$0xf]
        %v512 = vld [vmem:[#allocation6 + $0x18c] sm:$0xf]
        %v513 = vld [vmem:[#allocation6 + $0x190] sm:$0xf]
        %v514 = vld [vmem:[#allocation6 + $0x194] sm:$0xf]
        %v515 = vld [vmem:[#allocation6 + $0x198] sm:$0xf]
        %v516 = vld [vmem:[#allocation6 + $0x19c] sm:$0xf]
        %v517 = vld [vmem:[#allocation6 + $0x1a0] sm:$0xf]
        %v518 = vld [vmem:[#allocation6 + $0x1a4] sm:$0xf]
        %v519 = vld [vmem:[#allocation6 + $0x1a8] sm:$0xf]
        %v520 = vld [vmem:[#allocation6 + $0x1ac] sm:$0xf]
        %v521 = vld [vmem:[#allocation6 + $0x1b0] sm:$0xf]
        %v522 = vld [vmem:[#allocation6 + $0x1b4] sm:$0xf]
        %v523 = vld [vmem:[#allocation6 + $0x1b8] sm:$0xf]
        %v524 = vld [vmem:[#allocation6 + $0x1bc] sm:$0xf]
        %v525 = vld [vmem:[#allocation6 + $0x1c0] sm:$0xf]
        %v526 = vld [vmem:[#allocation6 + $0x1c4] sm:$0xf]
        %v527 = vld [vmem:[#allocation6 + $0x1c8] sm:$0xf]
        %v528 = vld [vmem:[#allocation6 + $0x1cc] sm:$0xf]
        %v529 = vld [vmem:[#allocation6 + $0x1d0] sm:$0xf]
        %v530 = vld [vmem:[#allocation6 + $0x1d4] sm:$0xf]
        %v531 = vld [vmem:[#allocation6 + $0x1d8] sm:$0xf]
        %v532 = vld [vmem:[#allocation6 + $0x1dc] sm:$0xf]
        %v533 = vld [vmem:[#allocation6 + $0x1e0] sm:$0xf]
        %v534 = vld [vmem:[#allocation6 + $0x1e4] sm:$0xf]
        %v535 = vld [vmem:[#allocation6 + $0x1e8] sm:$0xf]
        %v536 = vld [vmem:[#allocation6 + $0x1ec] sm:$0xf]
        %v537 = vld [vmem:[#allocation6 + $0x1f0] sm:$0xf]
        %v538 = vld [vmem:[#allocation6 + $0x1f4] sm:$0xf]
        %v539 = vld [vmem:[#allocation6 + $0x1f8] sm:$0xf]
        %v540 = vld [vmem:[#allocation6 + $0x1fc] sm:$0xf]
        %v541 = vld [vmem:[#allocation6 + $0x200] sm:$0xf]
        %v542 = vld [vmem:[#allocation6 + $0x204] sm:$0xf]
        %v543 = vld [vmem:[#allocation6 + $0x208] sm:$0xf]
        %v544 = vld [vmem:[#allocation6 + $0x20c] sm:$0xf]
        %v545 = vld [vmem:[#allocation6 + $0x210] sm:$0xf]
        %v546 = vld [vmem:[#allocation6 + $0x214] sm:$0xf]
        %v547 = vld [vmem:[#allocation6 + $0x218] sm:$0xf]
        %v548 = vld [vmem:[#allocation6 + $0x21c] sm:$0xf]
        %v549 = vld [vmem:[#allocation6 + $0x220] sm:$0xf]
        %v550 = vld [vmem:[#allocation6 + $0x224] sm:$0xf]
        %v551 = vld [vmem:[#allocation6 + $0x228] sm:$0xf]
        %v552 = vld [vmem:[#allocation6 + $0x22c] sm:$0xf]
        %v553 = vld [vmem:[#allocation6 + $0x230] sm:$0xf]
        %v554 = vld [vmem:[#allocation6 + $0x234] sm:$0xf]
        %v555 = vld [vmem:[#allocation6 + $0x238] sm:$0xf]
        %v556 = vld [vmem:[#allocation6 + $0x23c] sm:$0xf]
        %v557 = vld [vmem:[#allocation6 + $0x240] sm:$0xf]
        %v558 = vld [vmem:[#allocation6 + $0x244] sm:$0xf]
        %v559 = vld [vmem:[#allocation6 + $0x248] sm:$0xf]
        %v560 = vld [vmem:[#allocation6 + $0x24c] sm:$0xf]
        %v561 = vld [vmem:[#allocation6 + $0x250] sm:$0xf]
        %v562 = vld [vmem:[#allocation6 + $0x254] sm:$0xf]
        %v563 = vld [vmem:[#allocation6 + $0x258] sm:$0xf]
        %v564 = vld [vmem:[#allocation6 + $0x25c] sm:$0xf]
        %v565 = vld [vmem:[#allocation6 + $0x260] sm:$0xf]
        %v566 = vld [vmem:[#allocation6 + $0x264] sm:$0xf]
        %v567 = vld [vmem:[#allocation6 + $0x268] sm:$0xf]
        %v568 = vld [vmem:[#allocation6 + $0x26c] sm:$0xf]
        %v569 = vld [vmem:[#allocation6 + $0x270] sm:$0xf]
        %v570 = vld [vmem:[#allocation6 + $0x274] sm:$0xf]
        %v571 = vld [vmem:[#allocation6 + $0x278] sm:$0xf]
        %v572 = vld [vmem:[#allocation6 + $0x27c] sm:$0xf]
        %v573 = vld [vmem:[#allocation6 + $0x280] sm:$0xf]
        %v574 = vld [vmem:[#allocation6 + $0x284] sm:$0xf]
        %v575 = vld [vmem:[#allocation6 + $0x288] sm:$0xf]
        %v576 = vld [vmem:[#allocation6 + $0x28c] sm:$0xf]
        %v577 = vld [vmem:[#allocation6 + $0x290] sm:$0xf]
        %v578 = vld [vmem:[#allocation6 + $0x294] sm:$0xf]
        %v579 = vld [vmem:[#allocation6 + $0x298] sm:$0xf]
        %v580 = vld [vmem:[#allocation6 + $0x29c] sm:$0xf]
        %v581 = vld [vmem:[#allocation6 + $0x2a0] sm:$0xf]
        %v582 = vld [vmem:[#allocation6 + $0x2a4] sm:$0xf]
        %v583 = vld [vmem:[#allocation6 + $0x2a8] sm:$0xf]
        %v584 = vld [vmem:[#allocation6 + $0x2ac] sm:$0xf]
        %v585 = vld [vmem:[#allocation6 + $0x2b0] sm:$0xf]
        %v586 = vld [vmem:[#allocation6 + $0x2b4] sm:$0xf]
        %v587 = vld [vmem:[#allocation6 + $0x2b8] sm:$0xf]
        %v588 = vld [vmem:[#allocation6 + $0x2bc] sm:$0xf]
        %v589 = vld [vmem:[#allocation6 + $0x2c0] sm:$0xf]
        %v590 = vld [vmem:[#allocation6 + $0x2c4] sm:$0xf]
        %v591 = vld [vmem:[#allocation6 + $0x2c8] sm:$0xf]
        %v592 = vld [vmem:[#allocation6 + $0x2cc] sm:$0xf]
        %v593 = vld [vmem:[#allocation6 + $0x2d0] sm:$0xf]
        %v594 = vld [vmem:[#allocation6 + $0x2d4] sm:$0xf]
        %v595 = vld [vmem:[#allocation6 + $0x2d8] sm:$0xf]
        %v596 = vld [vmem:[#allocation6 + $0x2dc] sm:$0xf]
        %v597 = vld [vmem:[#allocation6 + $0x2e0] sm:$0xf]
        %v598 = vld [vmem:[#allocation6 + $0x2e4] sm:$0xf]
        %v599 = vld [vmem:[#allocation6 + $0x2e8] sm:$0xf]
        %v600 = vld [vmem:[#allocation6 + $0x2ec] sm:$0xf]
        %v601 = vld [vmem:[#allocation6 + $0x2f0] sm:$0xf]
        %v602 = vld [vmem:[#allocation6 + $0x2f4] sm:$0xf]
        %v603 = vld [vmem:[#allocation6 + $0x2f8] sm:$0xf]
        %v604 = vld [vmem:[#allocation6 + $0x2fc] sm:$0xf]
        %v605 = vld [vmem:[%s2] sm:$0x1]
        %v607 = vlaneseq
        %v608 = vshrl.u32 %v607, 7
        %v609 = vsub.s32 0, %v608
        %v610 = vrot.slane %v605, %v609
        %vm612 = vsmask.f32 256
        %v614 = vshrl.u32 %v295, 16
        %v616 = vrot.slane %v614, 7
        %v617 = vrot.slane %v314, 7
        %v618 = vor.u32 %v617, %v311
        %v619 = vsel %vm612, %v616, %v618
        %v621 = vshrl.u32 %v313, 16
        %v623 = vrot.slane %v621, 7
        %v625 = vshrl.u32 %v321, 16
        %v627 = vrot.slane %v625, 7
        %v628 = vshll.u32 %v321, 16
        %v630 = vor.u32 %v627, %v628
        %v631 = vsel %vm612, %v623, %v630
        %v633 = vshrl.u32 %v329, 16
        %v635 = vrot.slane %v633, 7
        %v637 = vshrl.u32 %v331, 16
        %v639 = vrot.slane %v637, 7
        %v640 = vshll.u32 %v331, 16
        %v642 = vor.u32 %v639, %v640
        %v643 = vsel %vm612, %v635, %v642
        %v645 = vshrl.u32 %v338, 16
        %v647 = vrot.slane %v645, 7
        %v649 = vshrl.u32 %v340, 16
        %v651 = vrot.slane %v649, 7
        %v652 = vshll.u32 %v340, 16
        %v654 = vor.u32 %v651, %v652
        %v655 = vsel %vm612, %v647, %v654
        %v657 = vshrl.u32 %v347, 16
        %v659 = vrot.slane %v657, 7
        %v661 = vshrl.u32 %v355, 16
        %v663 = vrot.slane %v661, 7
        %v664 = vshll.u32 %v355, 16
        %v666 = vor.u32 %v663, %v664
        %v667 = vsel %vm612, %v659, %v666
        %v669 = vshrl.u32 %v368, 16
        %v671 = vrot.slane %v669, 7
        %v673 = vshrl.u32 %v370, 16
        %v675 = vrot.slane %v673, 7
        %v676 = vshll.u32 %v370, 16
        %v678 = vor.u32 %v675, %v676
        %v679 = vsel %vm612, %v671, %v678
        %v681 = vshrl.u32 %v375, 16
        %v683 = vrot.slane %v681, 7
        %v685 = vshrl.u32 %v377, 16
        %v687 = vrot.slane %v685, 7
        %v688 = vshll.u32 %v377, 16
        %v690 = vor.u32 %v687, %v688
        %v691 = vsel %vm612, %v683, %v690
        %v693 = vshrl.u32 %v383, 16
        %v695 = vrot.slane %v693, 7
        %v697 = vshrl.u32 %v396, 16
        %v699 = vrot.slane %v697, 7
        %v700 = vshll.u32 %v396, 16
        %v702 = vor.u32 %v699, %v700
        %v703 = vsel %vm612, %v695, %v702
        %v705 = vshrl.u32 %v408, 16
        %v707 = vrot.slane %v705, 7
        %v709 = vshrl.u32 %v410, 16
        %v711 = vrot.slane %v709, 7
        %v712 = vshll.u32 %v410, 16
        %v714 = vor.u32 %v711, %v712
        %v715 = vsel %vm612, %v707, %v714
        %v716 = vrot.slane %v322, 7
        %v717 = vor.u32 %v716, %v318
        %v718 = vsel %vm612, %v617, %v717
        %v720 = vshrl.u32 %v324, 16
        %v722 = vrot.slane %v720, 7
        %v723 = vshll.u32 %v324, 16
        %v725 = vor.u32 %v722, %v723
        %v726 = vsel %vm612, %v627, %v725
        %v728 = vshrl.u32 %v333, 16
        %v730 = vrot.slane %v728, 7
        %v731 = vshll.u32 %v333, 16
        %v733 = vor.u32 %v730, %v731
        %v734 = vsel %vm612, %v639, %v733
        %v736 = vshrl.u32 %v342, 16
        %v738 = vrot.slane %v736, 7
        %v739 = vshll.u32 %v342, 16
        %v741 = vor.u32 %v738, %v739
        %v742 = vsel %vm612, %v651, %v741
        %v744 = vshrl.u32 %v364, 16
        %v746 = vrot.slane %v744, 7
        %v747 = vshll.u32 %v364, 16
        %v749 = vor.u32 %v746, %v747
        %v750 = vsel %vm612, %v663, %v749
        %v752 = vshrl.u32 %v372, 16
        %v754 = vrot.slane %v752, 7
        %v755 = vshll.u32 %v372, 16
        %v757 = vor.u32 %v754, %v755
        %v758 = vsel %vm612, %v675, %v757
        %v760 = vshrl.u32 %v379, 16
        %v762 = vrot.slane %v760, 7
        %v763 = vshll.u32 %v379, 16
        %v765 = vor.u32 %v762, %v763
        %v766 = vsel %vm612, %v687, %v765
        %v768 = vshrl.u32 %v405, 16
        %v770 = vrot.slane %v768, 7
        %v771 = vshll.u32 %v405, 16
        %v773 = vor.u32 %v770, %v771
        %v774 = vsel %vm612, %v699, %v773
        %v776 = vshrl.u32 %v412, 16
        %v778 = vrot.slane %v776, 7
        %v779 = vshll.u32 %v412, 16
        %v781 = vor.u32 %v778, %v779
        %v782 = vsel %vm612, %v711, %v781
        %v993 = vunpack.c.l.b16 %v413
        %v994 = vunpack.c.l.b16 %v414
        %v995 = vunpack.c.l.b16 %v415
        %v996 = vunpack.c.l.b16 %v416
        %v997 = vunpack.c.l.b16 %v417
        %v998 = vunpack.c.l.b16 %v418
        %v999 = vunpack.c.l.b16 %v419
        %v1000 = vunpack.c.l.b16 %v420
        %v1001 = vunpack.c.l.b16 %v421
        %v1002 = vunpack.c.l.b16 %v422
        %v1003 = vunpack.c.l.b16 %v423
        %v1004 = vunpack.c.l.b16 %v424
        %v1005 = vunpack.c.l.b16 %v425
        %v1006 = vunpack.c.l.b16 %v426
        %v1007 = vunpack.c.l.b16 %v427
        %v1008 = vunpack.c.l.b16 %v428
        %v1009 = vunpack.c.l.b16 %v429
        %v1010 = vunpack.c.l.b16 %v430
        %v1011 = vunpack.c.l.b16 %v431
        %v1012 = vunpack.c.l.b16 %v432
        %v1013 = vunpack.c.l.b16 %v433
        %v1014 = vunpack.c.l.b16 %v434
        %v1015 = vunpack.c.l.b16 %v435
        %v1016 = vunpack.c.l.b16 %v436
        %v1017 = vunpack.c.l.b16 %v437
        %v1018 = vunpack.c.l.b16 %v438
        %v1019 = vunpack.c.l.b16 %v439
        %v1020 = vunpack.c.l.b16 %v440
        %v1021 = vunpack.c.l.b16 %v441
        %v1022 = vunpack.c.l.b16 %v442
        %v1023 = vunpack.c.l.b16 %v443
        %v1024 = vunpack.c.l.b16 %v444
        %v1025 = vunpack.c.l.b16 %v445
        %v1026 = vunpack.c.l.b16 %v446
        %v1027 = vunpack.c.l.b16 %v447
        %v1028 = vunpack.c.l.b16 %v448
        %v1029 = vunpack.c.l.b16 %v449
        %v1030 = vunpack.c.l.b16 %v450
        %v1031 = vunpack.c.l.b16 %v451
        %v1032 = vunpack.c.l.b16 %v452
        %v1033 = vunpack.c.l.b16 %v453
        %v1034 = vunpack.c.l.b16 %v454
        %v1035 = vunpack.c.l.b16 %v455
        %v1036 = vunpack.c.l.b16 %v456
        %v1037 = vunpack.c.l.b16 %v457
        %v1038 = vunpack.c.l.b16 %v458
        %v1039 = vunpack.c.l.b16 %v459
        %v1040 = vunpack.c.l.b16 %v460
        %v1041 = vunpack.c.l.b16 %v461
        %v1042 = vunpack.c.l.b16 %v462
        %v1043 = vunpack.c.l.b16 %v463
        %v1044 = vunpack.c.l.b16 %v464
        %v1045 = vunpack.c.l.b16 %v465
        %v1046 = vunpack.c.l.b16 %v466
        %v1047 = vunpack.c.l.b16 %v467
        %v1048 = vunpack.c.l.b16 %v468
        %v1049 = vunpack.c.l.b16 %v469
        %v1050 = vunpack.c.l.b16 %v470
        %v1051 = vunpack.c.l.b16 %v471
        %v1052 = vunpack.c.l.b16 %v472
        %v1053 = vunpack.c.l.b16 %v473
        %v1054 = vunpack.c.l.b16 %v474
        %v1055 = vunpack.c.l.b16 %v475
        %v1056 = vunpack.c.l.b16 %v476
        %v1057 = vunpack.c.l.b16 %v477
        %v1058 = vunpack.c.l.b16 %v478
        %v1059 = vunpack.c.l.b16 %v479
        %v1060 = vunpack.c.l.b16 %v480
        %v1061 = vunpack.c.l.b16 %v481
        %v1062 = vunpack.c.l.b16 %v482
        %v1063 = vunpack.c.l.b16 %v483
        %v1064 = vunpack.c.l.b16 %v484
        %v1065 = vunpack.c.l.b16 %v485
        %v1066 = vunpack.c.l.b16 %v486
        %v1067 = vunpack.c.l.b16 %v487
        %v1068 = vunpack.c.l.b16 %v488
        %v1069 = vunpack.c.l.b16 %v489
        %v1070 = vunpack.c.l.b16 %v490
        %v1071 = vunpack.c.l.b16 %v491
        %v1072 = vunpack.c.l.b16 %v492
        %v1073 = vunpack.c.l.b16 %v493
        %v1074 = vunpack.c.l.b16 %v494
        %v1075 = vunpack.c.l.b16 %v495
        %v1076 = vunpack.c.l.b16 %v496
        %v1077 = vunpack.c.l.b16 %v497
        %v1078 = vunpack.c.l.b16 %v498
        %v1079 = vunpack.c.l.b16 %v499
        %v1080 = vunpack.c.l.b16 %v500
        %v1081 = vunpack.c.l.b16 %v501
        %v1082 = vunpack.c.l.b16 %v502
        %v1083 = vunpack.c.l.b16 %v503
        %v1084 = vunpack.c.l.b16 %v504
        %v1085 = vunpack.c.l.b16 %v505
        %v1086 = vunpack.c.l.b16 %v506
        %v1087 = vunpack.c.l.b16 %v507
        %v1088 = vunpack.c.l.b16 %v508
        %v1089 = vunpack.c.l.b16 %v509
        %v1090 = vunpack.c.l.b16 %v510
        %v1091 = vunpack.c.l.b16 %v511
        %v1092 = vunpack.c.l.b16 %v512
        %v1093 = vunpack.c.l.b16 %v513
        %v1094 = vunpack.c.l.b16 %v514
        %v1095 = vunpack.c.l.b16 %v515
        %v1096 = vunpack.c.l.b16 %v516
        %v1097 = vunpack.c.l.b16 %v517
        %v1098 = vunpack.c.l.b16 %v518
        %v1099 = vunpack.c.l.b16 %v519
        %v1100 = vunpack.c.l.b16 %v520
        %v1101 = vunpack.c.l.b16 %v521
        %v1102 = vunpack.c.l.b16 %v522
        %v1103 = vunpack.c.l.b16 %v523
        %v1104 = vunpack.c.l.b16 %v524
        %v1105 = vunpack.c.l.b16 %v525
        %v1106 = vunpack.c.l.b16 %v526
        %v1107 = vunpack.c.l.b16 %v527
        %v1108 = vunpack.c.l.b16 %v528
        %v1109 = vunpack.c.l.b16 %v529
        %v1110 = vunpack.c.l.b16 %v530
        %v1111 = vunpack.c.l.b16 %v531
        %v1112 = vunpack.c.l.b16 %v532
        %v1113 = vunpack.c.l.b16 %v533
        %v1114 = vunpack.c.l.b16 %v534
        %v1115 = vunpack.c.l.b16 %v535
        %v1116 = vunpack.c.l.b16 %v536
        %v1117 = vunpack.c.l.b16 %v537
        %v1118 = vunpack.c.l.b16 %v538
        %v1119 = vunpack.c.l.b16 %v539
        %v1120 = vunpack.c.l.b16 %v540
        %v1121 = vunpack.c.l.b16 %v541
        %v1122 = vunpack.c.l.b16 %v542
        %v1123 = vunpack.c.l.b16 %v543
        %v1124 = vunpack.c.l.b16 %v544
        %v1125 = vunpack.c.l.b16 %v545
        %v1126 = vunpack.c.l.b16 %v546
        %v1127 = vunpack.c.l.b16 %v547
        %v1128 = vunpack.c.l.b16 %v548
        %v1129 = vunpack.c.l.b16 %v549
        %v1130 = vunpack.c.l.b16 %v550
        %v1131 = vunpack.c.l.b16 %v551
        %v1132 = vunpack.c.l.b16 %v552
        %v1133 = vunpack.c.l.b16 %v553
        %v1134 = vunpack.c.l.b16 %v554
        %v1135 = vunpack.c.l.b16 %v555
        %v1136 = vunpack.c.l.b16 %v556
        %v1137 = vunpack.c.l.b16 %v557
        %v1138 = vunpack.c.l.b16 %v558
        %v1139 = vunpack.c.l.b16 %v559
        %v1140 = vunpack.c.l.b16 %v560
        %v1141 = vunpack.c.l.b16 %v561
        %v1142 = vunpack.c.l.b16 %v562
        %v1143 = vunpack.c.l.b16 %v563
        %v1144 = vunpack.c.l.b16 %v564
        %v1145 = vunpack.c.l.b16 %v565
        %v1146 = vunpack.c.l.b16 %v566
        %v1147 = vunpack.c.l.b16 %v567
        %v1148 = vunpack.c.l.b16 %v568
        %v1149 = vunpack.c.l.b16 %v569
        %v1150 = vunpack.c.l.b16 %v570
        %v1151 = vunpack.c.l.b16 %v571
        %v1152 = vunpack.c.l.b16 %v572
        %v1153 = vunpack.c.l.b16 %v573
        %v1154 = vunpack.c.l.b16 %v574
        %v1155 = vunpack.c.l.b16 %v575
        %v1156 = vunpack.c.l.b16 %v576
        %v1157 = vunpack.c.l.b16 %v577
        %v1158 = vunpack.c.l.b16 %v578
        %v1159 = vunpack.c.l.b16 %v579
        %v1160 = vunpack.c.l.b16 %v580
        %v1161 = vunpack.c.l.b16 %v581
        %v1162 = vunpack.c.l.b16 %v582
        %v1163 = vunpack.c.l.b16 %v583
        %v1164 = vunpack.c.l.b16 %v584
        %v1165 = vunpack.c.l.b16 %v585
        %v1166 = vunpack.c.l.b16 %v586
        %v1167 = vunpack.c.l.b16 %v587
        %v1168 = vunpack.c.l.b16 %v588
        %v1169 = vunpack.c.l.b16 %v589
        %v1170 = vunpack.c.l.b16 %v590
        %v1171 = vunpack.c.l.b16 %v591
        %v1172 = vunpack.c.l.b16 %v592
        %v1173 = vunpack.c.l.b16 %v593
        %v1174 = vunpack.c.l.b16 %v594
        %v1175 = vunpack.c.l.b16 %v595
        %v1176 = vunpack.c.l.b16 %v596
        %v1177 = vunpack.c.l.b16 %v597
        %v1178 = vunpack.c.l.b16 %v598
        %v1179 = vunpack.c.l.b16 %v599
        %v1180 = vunpack.c.l.b16 %v600
        %v1181 = vunpack.c.l.b16 %v601
        %v1182 = vunpack.c.l.b16 %v602
        %v1183 = vunpack.c.l.b16 %v603
        %v1184 = vunpack.c.l.b16 %v604
        %v1185 = vpack.c.b16 %v994, %v993
        %v1186 = vpack.c.b16 %v996, %v995
        %v1187 = vpack.c.b16 %v998, %v997
        %v1188 = vpack.c.b16 %v1000, %v999
        %v1189 = vpack.c.b16 %v1002, %v1001
        %v1190 = vpack.c.b16 %v1004, %v1003
        %v1191 = vpack.c.b16 %v1006, %v1005
        %v1192 = vpack.c.b16 %v1008, %v1007
        %v1193 = vpack.c.b16 %v1010, %v1009
        %v1194 = vpack.c.b16 %v1012, %v1011
        %v1195 = vpack.c.b16 %v1014, %v1013
        %v1196 = vpack.c.b16 %v1016, %v1015
        %v1197 = vpack.c.b16 %v1018, %v1017
        %v1198 = vpack.c.b16 %v1020, %v1019
        %v1199 = vpack.c.b16 %v1022, %v1021
        %v1200 = vpack.c.b16 %v1024, %v1023
        %v1201 = vpack.c.b16 %v1026, %v1025
        %v1202 = vpack.c.b16 %v1028, %v1027
        %v1203 = vpack.c.b16 %v1030, %v1029
        %v1204 = vpack.c.b16 %v1032, %v1031
        %v1205 = vpack.c.b16 %v1034, %v1033
        %v1206 = vpack.c.b16 %v1036, %v1035
        %v1207 = vpack.c.b16 %v1038, %v1037
        %v1208 = vpack.c.b16 %v1040, %v1039
        %v1209 = vpack.c.b16 %v1042, %v1041
        %v1210 = vpack.c.b16 %v1044, %v1043
        %v1211 = vpack.c.b16 %v1046, %v1045
        %v1212 = vpack.c.b16 %v1048, %v1047
        %v1213 = vpack.c.b16 %v1050, %v1049
        %v1214 = vpack.c.b16 %v1052, %v1051
        %v1215 = vpack.c.b16 %v1054, %v1053
        %v1216 = vpack.c.b16 %v1056, %v1055
        %v1217 = vpack.c.b16 %v1058, %v1057
        %v1218 = vpack.c.b16 %v1060, %v1059
        %v1219 = vpack.c.b16 %v1062, %v1061
        %v1220 = vpack.c.b16 %v1064, %v1063
        %v1221 = vpack.c.b16 %v1066, %v1065
        %v1222 = vpack.c.b16 %v1068, %v1067
        %v1223 = vpack.c.b16 %v1070, %v1069
        %v1224 = vpack.c.b16 %v1072, %v1071
        %v1225 = vpack.c.b16 %v1074, %v1073
        %v1226 = vpack.c.b16 %v1076, %v1075
        %v1227 = vpack.c.b16 %v1078, %v1077
        %v1228 = vpack.c.b16 %v1080, %v1079
        %v1229 = vpack.c.b16 %v1082, %v1081
        %v1230 = vpack.c.b16 %v1084, %v1083
        %v1231 = vpack.c.b16 %v1086, %v1085
        %v1232 = vpack.c.b16 %v1088, %v1087
        %v1233 = vpack.c.b16 %v1090, %v1089
        %v1234 = vpack.c.b16 %v1092, %v1091
        %v1235 = vpack.c.b16 %v1094, %v1093
        %v1236 = vpack.c.b16 %v1096, %v1095
        %v1237 = vpack.c.b16 %v1098, %v1097
        %v1238 = vpack.c.b16 %v1100, %v1099
        %v1239 = vpack.c.b16 %v1102, %v1101
        %v1240 = vpack.c.b16 %v1104, %v1103
        %v1241 = vpack.c.b16 %v1106, %v1105
        %v1242 = vpack.c.b16 %v1108, %v1107
        %v1243 = vpack.c.b16 %v1110, %v1109
        %v1244 = vpack.c.b16 %v1112, %v1111
        %v1245 = vpack.c.b16 %v1114, %v1113
        %v1246 = vpack.c.b16 %v1116, %v1115
        %v1247 = vpack.c.b16 %v1118, %v1117
        %v1248 = vpack.c.b16 %v1120, %v1119
        %v1249 = vpack.c.b16 %v1122, %v1121
        %v1250 = vpack.c.b16 %v1124, %v1123
        %v1251 = vpack.c.b16 %v1126, %v1125
        %v1252 = vpack.c.b16 %v1128, %v1127
        %v1253 = vpack.c.b16 %v1130, %v1129
        %v1254 = vpack.c.b16 %v1132, %v1131
        %v1255 = vpack.c.b16 %v1134, %v1133
        %v1256 = vpack.c.b16 %v1136, %v1135
        %v1257 = vpack.c.b16 %v1138, %v1137
        %v1258 = vpack.c.b16 %v1140, %v1139
        %v1259 = vpack.c.b16 %v1142, %v1141
        %v1260 = vpack.c.b16 %v1144, %v1143
        %v1261 = vpack.c.b16 %v1146, %v1145
        %v1262 = vpack.c.b16 %v1148, %v1147
        %v1263 = vpack.c.b16 %v1150, %v1149
        %v1264 = vpack.c.b16 %v1152, %v1151
        %v1265 = vpack.c.b16 %v1154, %v1153
        %v1266 = vpack.c.b16 %v1156, %v1155
        %v1267 = vpack.c.b16 %v1158, %v1157
        %v1268 = vpack.c.b16 %v1160, %v1159
        %v1269 = vpack.c.b16 %v1162, %v1161
        %v1270 = vpack.c.b16 %v1164, %v1163
        %v1271 = vpack.c.b16 %v1166, %v1165
        %v1272 = vpack.c.b16 %v1168, %v1167
        %v1273 = vpack.c.b16 %v1170, %v1169
        %v1274 = vpack.c.b16 %v1172, %v1171
        %v1275 = vpack.c.b16 %v1174, %v1173
        %v1276 = vpack.c.b16 %v1176, %v1175
        %v1277 = vpack.c.b16 %v1178, %v1177
        %v1278 = vpack.c.b16 %v1180, %v1179
        %v1279 = vpack.c.b16 %v1182, %v1181
        %v1280 = vpack.c.b16 %v1184, %v1183
        %1377 = vmatprep.subr.bf16.mxu0 0
        %1378 = vmatpush1.bf16.msra.mxu0 %v1185
        %1379 = vmatprep.subr.bf16.mxu0 0
        %1380 = vmatpush1.bf16.msra.mxu0 %v1186
        %1381 = vmatprep.subr.bf16.mxu0 0
        %1382 = vmatpush1.bf16.msra.mxu0 %v1187
        %1383 = vmatprep.subr.bf16.mxu0 0
        %1384 = vmatpush1.bf16.msra.mxu0 %v1188
        %1385 = vmatprep.subr.bf16.mxu0 0
        %1386 = vmatpush1.bf16.msra.mxu0 %v1189
        %1387 = vmatprep.subr.bf16.mxu0 0
        %1388 = vmatpush1.bf16.msra.mxu0 %v1190
        %1389 = vmatprep.subr.bf16.mxu0 0
        %1390 = vmatpush1.bf16.msra.mxu0 %v1191
        %1391 = vmatprep.subr.bf16.mxu0 0
        %1392 = vmatpush1.bf16.msra.mxu0 %v1192
        %1393 = vmatprep.subr.bf16.mxu0 0
        %1394 = vmatpush1.bf16.msra.mxu0 %v1193
        %1395 = vmatprep.subr.bf16.mxu0 0
        %1396 = vmatpush1.bf16.msra.mxu0 %v1194
        %1397 = vmatprep.subr.bf16.mxu0 0
        %1398 = vmatpush1.bf16.msra.mxu0 %v1195
        %1399 = vmatprep.subr.bf16.mxu0 0
        %1400 = vmatpush1.bf16.msra.mxu0 %v1196
        %1401 = vmatprep.subr.bf16.mxu0 0
        %1402 = vmatpush1.bf16.msra.mxu0 %v1197
        %1403 = vmatprep.subr.bf16.mxu0 0
        %1404 = vmatpush1.bf16.msra.mxu0 %v1198
        %1405 = vmatprep.subr.bf16.mxu0 0
        %1406 = vmatpush1.bf16.msra.mxu0 %v1199
        %1407 = vmatprep.subr.bf16.mxu0 0
        %1408 = vmatpush1.bf16.msra.mxu0 %v1200
        %1409 = vmatprep.mubr.bf16.mxu0 %v631
        %1410 = vmatmul.mubr.bf16.gmra.mrb[0].mxu0 %v619
        %v1411 = vpop.f32.mrb[0].mxu0
        %v1412 = vadd.f32 %v610, %v1411
        %v1413 = vpop.f32.mrb[0].mxu0
        %v1414 = vpop.f32.mrb[0].mxu0
        %v1415 = vadd.f32 %v610, %v1414
        %v1416 = vpop.f32.mrb[0].mxu0
        %1417 = vmatprep.mubr.bf16.mxu0 %v726
        %1418 = vmatmul.mubr.bf16.gmra.mrb[0].mxu0 %v718
        %v1419 = vpop.f32.mrb[0].mxu0
        %v1420 = vadd.f32 %v610, %v1419
        %v1421 = vpop.f32.mrb[0].mxu0
        %v1422 = vpop.f32.mrb[0].mxu0
        %v1423 = vadd.f32 %v610, %v1422
        %v1424 = vpop.f32.mrb[0].mxu0
        %1425 = vdwg.mxu0
        %1426 = vmatprep.subr.bf16.mxu0 0
        %1427 = vmatpush1.bf16.msra.mxu0 %v1201
        %1428 = vmatprep.subr.bf16.mxu0 0
        %1429 = vmatpush1.bf16.msra.mxu0 %v1202
        %1430 = vmatprep.subr.bf16.mxu0 0
        %1431 = vmatpush1.bf16.msra.mxu0 %v1203
        %1432 = vmatprep.subr.bf16.mxu0 0
        %1433 = vmatpush1.bf16.msra.mxu0 %v1204
        %1434 = vmatprep.subr.bf16.mxu0 0
        %1435 = vmatpush1.bf16.msra.mxu0 %v1205
        %1436 = vmatprep.subr.bf16.mxu0 0
        %1437 = vmatpush1.bf16.msra.mxu0 %v1206
        %1438 = vmatprep.subr.bf16.mxu0 0
        %1439 = vmatpush1.bf16.msra.mxu0 %v1207
        %1440 = vmatprep.subr.bf16.mxu0 0
        %1441 = vmatpush1.bf16.msra.mxu0 %v1208
        %1442 = vmatprep.subr.bf16.mxu0 0
        %1443 = vmatpush1.bf16.msra.mxu0 %v1209
        %1444 = vmatprep.subr.bf16.mxu0 0
        %1445 = vmatpush1.bf16.msra.mxu0 %v1210
        %1446 = vmatprep.subr.bf16.mxu0 0
        %1447 = vmatpush1.bf16.msra.mxu0 %v1211
        %1448 = vmatprep.subr.bf16.mxu0 0
        %1449 = vmatpush1.bf16.msra.mxu0 %v1212
        %1450 = vmatprep.subr.bf16.mxu0 0
        %1451 = vmatpush1.bf16.msra.mxu0 %v1213
        %1452 = vmatprep.subr.bf16.mxu0 0
        %1453 = vmatpush1.bf16.msra.mxu0 %v1214
        %1454 = vmatprep.subr.bf16.mxu0 0
        %1455 = vmatpush1.bf16.msra.mxu0 %v1215
        %1456 = vmatprep.subr.bf16.mxu0 0
        %1457 = vmatpush1.bf16.msra.mxu0 %v1216
        %1458 = vmatprep.mubr.bf16.mxu0 %v655
        %1459 = vmatmul.mubr.bf16.gmra.mrb[0].mxu0 %v643
        %v1460 = vpop.f32.mrb[0].mxu0
        %v1461 = vadd.f32 %v1412, %v1460
        %v1462 = vpop.f32.mrb[0].mxu0
        %v1463 = vpop.f32.mrb[0].mxu0
        %v1464 = vadd.f32 %v1415, %v1463
        %v1465 = vpop.f32.mrb[0].mxu0
        %1466 = vmatprep.mubr.bf16.mxu0 %v742
        %1467 = vmatmul.mubr.bf16.gmra.mrb[0].mxu0 %v734
        %v1468 = vpop.f32.mrb[0].mxu0
        %v1469 = vadd.f32 %v1420, %v1468
        %v1470 = vpop.f32.mrb[0].mxu0
        %v1471 = vpop.f32.mrb[0].mxu0
        %v1472 = vadd.f32 %v1423, %v1471
        %v1473 = vpop.f32.mrb[0].mxu0
        %1474 = vdwg.mxu0
        %1475 = vmatprep.subr.bf16.mxu0 0
        %1476 = vmatpush1.bf16.msra.mxu0 %v1217
        %1477 = vmatprep.subr.bf16.mxu0 0
        %1478 = vmatpush1.bf16.msra.mxu0 %v1218
        %1479 = vmatprep.subr.bf16.mxu0 0
        %1480 = vmatpush1.bf16.msra.mxu0 %v1219
        %1481 = vmatprep.subr.bf16.mxu0 0
        %1482 = vmatpush1.bf16.msra.mxu0 %v1220
        %1483 = vmatprep.subr.bf16.mxu0 0
        %1484 = vmatpush1.bf16.msra.mxu0 %v1221
        %1485 = vmatprep.subr.bf16.mxu0 0
        %1486 = vmatpush1.bf16.msra.mxu0 %v1222
        %1487 = vmatprep.subr.bf16.mxu0 0
        %1488 = vmatpush1.bf16.msra.mxu0 %v1223
        %1489 = vmatprep.subr.bf16.mxu0 0
        %1490 = vmatpush1.bf16.msra.mxu0 %v1224
        %1491 = vmatprep.subr.bf16.mxu0 0
        %1492 = vmatpush1.bf16.msra.mxu0 %v1225
        %1493 = vmatprep.subr.bf16.mxu0 0
        %1494 = vmatpush1.bf16.msra.mxu0 %v1226
        %1495 = vmatprep.subr.bf16.mxu0 0
        %1496 = vmatpush1.bf16.msra.mxu0 %v1227
        %1497 = vmatprep.subr.bf16.mxu0 0
        %1498 = vmatpush1.bf16.msra.mxu0 %v1228
        %1499 = vmatprep.subr.bf16.mxu0 0
        %1500 = vmatpush1.bf16.msra.mxu0 %v1229
        %1501 = vmatprep.subr.bf16.mxu0 0
        %1502 = vmatpush1.bf16.msra.mxu0 %v1230
        %1503 = vmatprep.subr.bf16.mxu0 0
        %1504 = vmatpush1.bf16.msra.mxu0 %v1231
        %1505 = vmatprep.subr.bf16.mxu0 0
        %1506 = vmatpush1.bf16.msra.mxu0 %v1232
        %1507 = vmatprep.mubr.bf16.mxu0 %v679
        %1508 = vmatmul.mubr.bf16.gmra.mrb[0].mxu0 %v667
        %v1509 = vpop.f32.mrb[0].mxu0
        %v1510 = vadd.f32 %v1461, %v1509
        %v1511 = vpop.f32.mrb[0].mxu0
        %v1512 = vpop.f32.mrb[0].mxu0
        %v1513 = vadd.f32 %v1464, %v1512
        %v1514 = vpop.f32.mrb[0].mxu0
        %1515 = vmatprep.mubr.bf16.mxu0 %v758
        %1516 = vmatmul.mubr.bf16.gmra.mrb[0].mxu0 %v750
        %v1517 = vpop.f32.mrb[0].mxu0
        %v1518 = vadd.f32 %v1469, %v1517
        %v1519 = vpop.f32.mrb[0].mxu0
        %v1520 = vpop.f32.mrb[0].mxu0
        %v1521 = vadd.f32 %v1472, %v1520
        %v1522 = vpop.f32.mrb[0].mxu0
        %1523 = vdwg.mxu0
        %1524 = vmatprep.subr.bf16.mxu0 0
        %1525 = vmatpush1.bf16.msra.mxu0 %v1233
        %1526 = vmatprep.subr.bf16.mxu0 0
        %1527 = vmatpush1.bf16.msra.mxu0 %v1234
        %1528 = vmatprep.subr.bf16.mxu0 0
        %1529 = vmatpush1.bf16.msra.mxu0 %v1235
        %1530 = vmatprep.subr.bf16.mxu0 0
        %1531 = vmatpush1.bf16.msra.mxu0 %v1236
        %1532 = vmatprep.subr.bf16.mxu0 0
        %1533 = vmatpush1.bf16.msra.mxu0 %v1237
        %1534 = vmatprep.subr.bf16.mxu0 0
        %1535 = vmatpush1.bf16.msra.mxu0 %v1238
        %1536 = vmatprep.subr.bf16.mxu0 0
        %1537 = vmatpush1.bf16.msra.mxu0 %v1239
        %1538 = vmatprep.subr.bf16.mxu0 0
        %1539 = vmatpush1.bf16.msra.mxu0 %v1240
        %1540 = vmatprep.subr.bf16.mxu0 0
        %1541 = vmatpush1.bf16.msra.mxu0 %v1241
        %1542 = vmatprep.subr.bf16.mxu0 0
        %1543 = vmatpush1.bf16.msra.mxu0 %v1242
        %1544 = vmatprep.subr.bf16.mxu0 0
        %1545 = vmatpush1.bf16.msra.mxu0 %v1243
        %1546 = vmatprep.subr.bf16.mxu0 0
        %1547 = vmatpush1.bf16.msra.mxu0 %v1244
        %1548 = vmatprep.subr.bf16.mxu0 0
        %1549 = vmatpush1.bf16.msra.mxu0 %v1245
        %1550 = vmatprep.subr.bf16.mxu0 0
        %1551 = vmatpush1.bf16.msra.mxu0 %v1246
        %1552 = vmatprep.subr.bf16.mxu0 0
        %1553 = vmatpush1.bf16.msra.mxu0 %v1247
        %1554 = vmatprep.subr.bf16.mxu0 0
        %1555 = vmatpush1.bf16.msra.mxu0 %v1248
        %1556 = vmatprep.mubr.bf16.mxu0 %v631
        %1557 = vmatmul.mubr.bf16.gmra.mrb[0].mxu0 %v619
        %v1558 = vpop.f32.mrb[0].mxu0
        %v1559 = vadd.f32 %v1510, %v1558
        %v1560 = vpop.f32.mrb[0].mxu0
        %v1561 = vpop.f32.mrb[0].mxu0
        %v1562 = vadd.f32 %v1513, %v1561
        %v1563 = vpop.f32.mrb[0].mxu0
        %1564 = vmatprep.mubr.bf16.mxu0 %v726
        %1565 = vmatmul.mubr.bf16.gmra.mrb[0].mxu0 %v718
        %v1566 = vpop.f32.mrb[0].mxu0
        %v1567 = vadd.f32 %v1518, %v1566
        %v1568 = vpop.f32.mrb[0].mxu0
        %v1569 = vpop.f32.mrb[0].mxu0
        %v1570 = vadd.f32 %v1521, %v1569
        %v1571 = vpop.f32.mrb[0].mxu0
        %1572 = vdwg.mxu0
        %1573 = vmatprep.subr.bf16.mxu0 0
        %1574 = vmatpush1.bf16.msra.mxu0 %v1249
        %1575 = vmatprep.subr.bf16.mxu0 0
        %1576 = vmatpush1.bf16.msra.mxu0 %v1250
        %1577 = vmatprep.subr.bf16.mxu0 0
        %1578 = vmatpush1.bf16.msra.mxu0 %v1251
        %1579 = vmatprep.subr.bf16.mxu0 0
        %1580 = vmatpush1.bf16.msra.mxu0 %v1252
        %1581 = vmatprep.subr.bf16.mxu0 0
        %1582 = vmatpush1.bf16.msra.mxu0 %v1253
        %1583 = vmatprep.subr.bf16.mxu0 0
        %1584 = vmatpush1.bf16.msra.mxu0 %v1254
        %1585 = vmatprep.subr.bf16.mxu0 0
        %1586 = vmatpush1.bf16.msra.mxu0 %v1255
        %1587 = vmatprep.subr.bf16.mxu0 0
        %1588 = vmatpush1.bf16.msra.mxu0 %v1256
        %1589 = vmatprep.subr.bf16.mxu0 0
        %1590 = vmatpush1.bf16.msra.mxu0 %v1257
        %1591 = vmatprep.subr.bf16.mxu0 0
        %1592 = vmatpush1.bf16.msra.mxu0 %v1258
        %1593 = vmatprep.subr.bf16.mxu0 0
        %1594 = vmatpush1.bf16.msra.mxu0 %v1259
        %1595 = vmatprep.subr.bf16.mxu0 0
        %1596 = vmatpush1.bf16.msra.mxu0 %v1260
        %1597 = vmatprep.subr.bf16.mxu0 0
        %1598 = vmatpush1.bf16.msra.mxu0 %v1261
        %1599 = vmatprep.subr.bf16.mxu0 0
        %1600 = vmatpush1.bf16.msra.mxu0 %v1262
        %1601 = vmatprep.subr.bf16.mxu0 0
        %1602 = vmatpush1.bf16.msra.mxu0 %v1263
        %1603 = vmatprep.subr.bf16.mxu0 0
        %1604 = vmatpush1.bf16.msra.mxu0 %v1264
        %1605 = vmatprep.mubr.bf16.mxu0 %v691
        %1606 = vmatmul.mubr.bf16.gmra.mrb[0].mxu0 %v643
        %v1607 = vpop.f32.mrb[0].mxu0
        %v1608 = vadd.f32 %v1559, %v1607
        %v1609 = vpop.f32.mrb[0].mxu0
        %v1610 = vpop.f32.mrb[0].mxu0
        %v1611 = vadd.f32 %v1562, %v1610
        %v1612 = vpop.f32.mrb[0].mxu0
        %1613 = vmatprep.mubr.bf16.mxu0 %v766
        %1614 = vmatmul.mubr.bf16.gmra.mrb[0].mxu0 %v734
        %v1615 = vpop.f32.mrb[0].mxu0
        %v1616 = vadd.f32 %v1567, %v1615
        %v1617 = vpop.f32.mrb[0].mxu0
        %v1618 = vpop.f32.mrb[0].mxu0
        %v1619 = vadd.f32 %v1570, %v1618
        %v1620 = vpop.f32.mrb[0].mxu0
        %1621 = vdwg.mxu0
        %1622 = vmatprep.subr.bf16.mxu0 0
        %1623 = vmatpush1.bf16.msra.mxu0 %v1265
        %1624 = vmatprep.subr.bf16.mxu0 0
        %1625 = vmatpush1.bf16.msra.mxu0 %v1266
        %1626 = vmatprep.subr.bf16.mxu0 0
        %1627 = vmatpush1.bf16.msra.mxu0 %v1267
        %1628 = vmatprep.subr.bf16.mxu0 0
        %1629 = vmatpush1.bf16.msra.mxu0 %v1268
        %1630 = vmatprep.subr.bf16.mxu0 0
        %1631 = vmatpush1.bf16.msra.mxu0 %v1269
        %1632 = vmatprep.subr.bf16.mxu0 0
        %1633 = vmatpush1.bf16.msra.mxu0 %v1270
        %1634 = vmatprep.subr.bf16.mxu0 0
        %1635 = vmatpush1.bf16.msra.mxu0 %v1271
        %1636 = vmatprep.subr.bf16.mxu0 0
        %1637 = vmatpush1.bf16.msra.mxu0 %v1272
        %1638 = vmatprep.subr.bf16.mxu0 0
        %1639 = vmatpush1.bf16.msra.mxu0 %v1273
        %1640 = vmatprep.subr.bf16.mxu0 0
        %1641 = vmatpush1.bf16.msra.mxu0 %v1274
        %1642 = vmatprep.subr.bf16.mxu0 0
        %1643 = vmatpush1.bf16.msra.mxu0 %v1275
        %1644 = vmatprep.subr.bf16.mxu0 0
        %1645 = vmatpush1.bf16.msra.mxu0 %v1276
        %1646 = vmatprep.subr.bf16.mxu0 0
        %1647 = vmatpush1.bf16.msra.mxu0 %v1277
        %1648 = vmatprep.subr.bf16.mxu0 0
        %1649 = vmatpush1.bf16.msra.mxu0 %v1278
        %1650 = vmatprep.subr.bf16.mxu0 0
        %1651 = vmatpush1.bf16.msra.mxu0 %v1279
        %1652 = vmatprep.subr.bf16.mxu0 0
        %1653 = vmatpush1.bf16.msra.mxu0 %v1280
        %1654 = vmatprep.mubr.bf16.mxu0 %v715
        %1655 = vmatmul.mubr.bf16.gmra.mrb[0].mxu0 %v703
        %v1656 = vpop.f32.mrb[0].mxu0
        %v1657 = vadd.f32 %v1608, %v1656
        %v1658 = vpop.f32.mrb[0].mxu0
        %v1659 = vpop.f32.mrb[0].mxu0
        %v1660 = vadd.f32 %v1611, %v1659
        %v1661 = vpop.f32.mrb[0].mxu0
        %1662 = vmatprep.mubr.bf16.mxu0 %v782
        %1663 = vmatmul.mubr.bf16.gmra.mrb[0].mxu0 %v774
        %v1664 = vpop.f32.mrb[0].mxu0
        %v1665 = vadd.f32 %v1616, %v1664
        %v1666 = vpop.f32.mrb[0].mxu0
        %v1667 = vpop.f32.mrb[0].mxu0
        %v1668 = vadd.f32 %v1619, %v1667
        %v1669 = vpop.f32.mrb[0].mxu0
        %1670 = vdwg.mxu0
        %v1671 = vmax.f32 %v1657, 0.0
        %v1672 = vmax.f32 %v1660, 0.0
        %v1673 = vmax.f32 %v1665, 0.0
        %v1674 = vmax.f32 %v1668, 0.0
        %v1675 = vpack.c.bf16 %v1672, %v1671
        %v1676 = vpack.c.bf16 %v1674, %v1673
        %1677 = vst [vmem:[#allocation2 + $0x8] sm:$0xff] %v1675
        %1678 = vst [vmem:[#allocation2 + $0x10] sm:$0xff] %v1676
        %v1679 = vld [vmem:[#allocation2] sm:$0x80]
        %v1680 = vld [vmem:[#allocation2 + $0x8] sm:$0xff]
        %v1681 = vld [vmem:[#allocation2 + $0x10] sm:$0xff]
        %v1682 = vld [vmem:[#allocation2 + $0x8] sm:$0xff]
        %v1683 = vld [vmem:[#allocation2 + $0x10] sm:$0xff]
        %v1684 = vld [vmem:[#allocation2 + $0x18] sm:$0x1]
        %v1685 = vld [vmem:[#allocation2] sm:$0xf8]
        %v1686 = vld [vmem:[#allocation2 + $0x10] sm:$0xf]
        %v1687 = vld [vmem:[#allocation2] sm:$0xf0]
        %v1688 = vld [vmem:[#allocation2 + $0x10] sm:$0x1f]
        %v1689 = vld [vmem:[#allocation2 + $0x8] sm:$0xf8]
        %v1690 = vld [vmem:[#allocation2 + $0x18] sm:$0xf]
        %v1691 = vld [vmem:[#allocation2 + $0x8] sm:$0xf0]
        %v1692 = vld [vmem:[#allocation2 + $0x18] sm:$0x1f]
        %v1694 = vshll.u32 %v1680, 16
        %v1696 = vrot.slane %v1694, 1
        %v1697 = vshrl.u32 %v1680, 16
        %v1699 = vor.u32 %v1697, %v1696
        %v1701 = vshll.u32 %v1681, 16
        %v1703 = vrot.slane %v1701, 1
        %v1704 = vsel %vm309, %v1699, %v1703
        %v1705 = vshrl.u32 %v1681, 16
        %v1707 = vor.u32 %v1705, %v1703
        %v1711 = vrot.slane %v1682, 1
        %v1712 = vrot.slane %v1683, 1
        %v1713 = vsel %vm328, %v1711, %v1712
        %v1714 = vrot.slane %v1684, 1
        %v1715 = vsel %vm328, %v1712, %v1714
        %v1719 = vrot.slane %v1685, 4
        %v1720 = vrot.slane %v1680, 4
        %v1721 = vsel %vm337, %v1719, %v1720
        %v1722 = vrot.slane %v1686, 4
        %v1723 = vsel %vm337, %v1720, %v1722
        %v1725 = vshll.u32 %v1687, 16
        %v1727 = vrot.slane %v1725, 5
        %v1728 = vshrl.u32 %v1687, 16
        %v1730 = vrot.slane %v1728, 4
        %v1731 = vor.u32 %v1730, %v1727
        %v1732 = vrot.slane %v1697, 4
        %v1733 = vrot.slane %v1694, 5
        %v1734 = vor.u32 %v1732, %v1733
        %v1735 = vsel %vm343, %v1731, %v1734
        %v1737 = vshrl.u32 %v1686, 16
        %v1739 = vrot.slane %v1737, 4
        %v1740 = vshll.u32 %v1686, 16
        %v1742 = vrot.slane %v1740, 5
        %v1743 = vor.u32 %v1739, %v1742
        %v1744 = vsel %vm343, %v1734, %v1743
        %v1747 = vrot.slane %v1687, 5
        %v1748 = vrot.slane %v1680, 5
        %v1749 = vsel %vm367, %v1747, %v1748
        %v1750 = vrot.slane %v1688, 5
        %v1751 = vsel %vm367, %v1748, %v1750
        %v1754 = vrot.slane %v1689, 4
        %v1755 = vrot.slane %v1683, 4
        %v1756 = vsel %vm337, %v1754, %v1755
        %v1757 = vrot.slane %v1690, 4
        %v1758 = vsel %vm337, %v1755, %v1757
        %v1760 = vshll.u32 %v1691, 16
        %v1762 = vrot.slane %v1760, 5
        %v1763 = vshrl.u32 %v1691, 16
        %v1765 = vrot.slane %v1763, 4
        %v1766 = vor.u32 %v1765, %v1762
        %v1768 = vshrl.u32 %v1683, 16
        %v1770 = vrot.slane %v1768, 4
        %v1771 = vshll.u32 %v1683, 16
        %v1773 = vrot.slane %v1771, 5
        %v1774 = vor.u32 %v1770, %v1773
        %v1775 = vsel %vm343, %v1766, %v1774
        %v1777 = vshrl.u32 %v1690, 16
        %v1779 = vrot.slane %v1777, 4
        %v1780 = vshll.u32 %v1690, 16
        %v1782 = vrot.slane %v1780, 5
        %v1783 = vor.u32 %v1779, %v1782
        %v1784 = vsel %vm343, %v1774, %v1783
        %v1787 = vrot.slane %v1691, 5
        %v1788 = vrot.slane %v1683, 5
        %v1789 = vsel %vm367, %v1787, %v1788
        %v1790 = vrot.slane %v1692, 5
        %v1791 = vsel %vm367, %v1788, %v1790
        %v1792 = vld [vmem:[#allocation8] sm:$0xf]
        %v1793 = vld [vmem:[#allocation8 + $0x4] sm:$0xf]
        %v1794 = vld [vmem:[#allocation8 + $0x8] sm:$0xf]
        %v1795 = vld [vmem:[#allocation8 + $0xc] sm:$0xf]
        %v1796 = vld [vmem:[#allocation8 + $0x10] sm:$0xf]
        %v1797 = vld [vmem:[#allocation8 + $0x14] sm:$0xf]
        %v1798 = vld [vmem:[#allocation8 + $0x18] sm:$0xf]
        %v1799 = vld [vmem:[#allocation8 + $0x1c] sm:$0xf]
        %v1800 = vld [vmem:[#allocation8 + $0x20] sm:$0xf]
        %v1801 = vld [vmem:[#allocation8 + $0x24] sm:$0xf]
        %v1802 = vld [vmem:[#allocation8 + $0x28] sm:$0xf]
        %v1803 = vld [vmem:[#allocation8 + $0x2c] sm:$0xf]
        %v1804 = vld [vmem:[#allocation8 + $0x30] sm:$0xf]
        %v1805 = vld [vmem:[#allocation8 + $0x34] sm:$0xf]
        %v1806 = vld [vmem:[#allocation8 + $0x38] sm:$0xf]
        %v1807 = vld [vmem:[#allocation8 + $0x3c] sm:$0xf]
        %v1808 = vld [vmem:[#allocation8 + $0x40] sm:$0xf]
        %v1809 = vld [vmem:[#allocation8 + $0x44] sm:$0xf]
        %v1810 = vld [vmem:[#allocation8 + $0x48] sm:$0xf]
        %v1811 = vld [vmem:[#allocation8 + $0x4c] sm:$0xf]
        %v1812 = vld [vmem:[#allocation8 + $0x50] sm:$0xf]
        %v1813 = vld [vmem:[#allocation8 + $0x54] sm:$0xf]
        %v1814 = vld [vmem:[#allocation8 + $0x58] sm:$0xf]
        %v1815 = vld [vmem:[#allocation8 + $0x5c] sm:$0xf]
        %v1816 = vld [vmem:[#allocation8 + $0x60] sm:$0xf]
        %v1817 = vld [vmem:[#allocation8 + $0x64] sm:$0xf]
        %v1818 = vld [vmem:[#allocation8 + $0x68] sm:$0xf]
        %v1819 = vld [vmem:[#allocation8 + $0x6c] sm:$0xf]
        %v1820 = vld [vmem:[#allocation8 + $0x70] sm:$0xf]
        %v1821 = vld [vmem:[#allocation8 + $0x74] sm:$0xf]
        %v1822 = vld [vmem:[#allocation8 + $0x78] sm:$0xf]
        %v1823 = vld [vmem:[#allocation8 + $0x7c] sm:$0xf]
        %v1824 = vld [vmem:[#allocation8 + $0x80] sm:$0xf]
        %v1825 = vld [vmem:[#allocation8 + $0x84] sm:$0xf]
        %v1826 = vld [vmem:[#allocation8 + $0x88] sm:$0xf]
        %v1827 = vld [vmem:[#allocation8 + $0x8c] sm:$0xf]
        %v1828 = vld [vmem:[#allocation8 + $0x90] sm:$0xf]
        %v1829 = vld [vmem:[#allocation8 + $0x94] sm:$0xf]
        %v1830 = vld [vmem:[#allocation8 + $0x98] sm:$0xf]
        %v1831 = vld [vmem:[#allocation8 + $0x9c] sm:$0xf]
        %v1832 = vld [vmem:[#allocation8 + $0xa0] sm:$0xf]
        %v1833 = vld [vmem:[#allocation8 + $0xa4] sm:$0xf]
        %v1834 = vld [vmem:[#allocation8 + $0xa8] sm:$0xf]
        %v1835 = vld [vmem:[#allocation8 + $0xac] sm:$0xf]
        %v1836 = vld [vmem:[#allocation8 + $0xb0] sm:$0xf]
        %v1837 = vld [vmem:[#allocation8 + $0xb4] sm:$0xf]
        %v1838 = vld [vmem:[#allocation8 + $0xb8] sm:$0xf]
        %v1839 = vld [vmem:[#allocation8 + $0xbc] sm:$0xf]
        %v1840 = vld [vmem:[#allocation8 + $0xc0] sm:$0xf]
        %v1841 = vld [vmem:[#allocation8 + $0xc4] sm:$0xf]
        %v1842 = vld [vmem:[#allocation8 + $0xc8] sm:$0xf]
        %v1843 = vld [vmem:[#allocation8 + $0xcc] sm:$0xf]
        %v1844 = vld [vmem:[#allocation8 + $0xd0] sm:$0xf]
        %v1845 = vld [vmem:[#allocation8 + $0xd4] sm:$0xf]
        %v1846 = vld [vmem:[#allocation8 + $0xd8] sm:$0xf]
        %v1847 = vld [vmem:[#allocation8 + $0xdc] sm:$0xf]
        %v1848 = vld [vmem:[#allocation8 + $0xe0] sm:$0xf]
        %v1849 = vld [vmem:[#allocation8 + $0xe4] sm:$0xf]
        %v1850 = vld [vmem:[#allocation8 + $0xe8] sm:$0xf]
        %v1851 = vld [vmem:[#allocation8 + $0xec] sm:$0xf]
        %v1852 = vld [vmem:[#allocation8 + $0xf0] sm:$0xf]
        %v1853 = vld [vmem:[#allocation8 + $0xf4] sm:$0xf]
        %v1854 = vld [vmem:[#allocation8 + $0xf8] sm:$0xf]
        %v1855 = vld [vmem:[#allocation8 + $0xfc] sm:$0xf]
        %v1856 = vld [vmem:[#allocation8 + $0x100] sm:$0xf]
        %v1857 = vld [vmem:[#allocation8 + $0x104] sm:$0xf]
        %v1858 = vld [vmem:[#allocation8 + $0x108] sm:$0xf]
        %v1859 = vld [vmem:[#allocation8 + $0x10c] sm:$0xf]
        %v1860 = vld [vmem:[#allocation8 + $0x110] sm:$0xf]
        %v1861 = vld [vmem:[#allocation8 + $0x114] sm:$0xf]
        %v1862 = vld [vmem:[#allocation8 + $0x118] sm:$0xf]
        %v1863 = vld [vmem:[#allocation8 + $0x11c] sm:$0xf]
        %v1864 = vld [vmem:[#allocation8 + $0x120] sm:$0xf]
        %v1865 = vld [vmem:[#allocation8 + $0x124] sm:$0xf]
        %v1866 = vld [vmem:[#allocation8 + $0x128] sm:$0xf]
        %v1867 = vld [vmem:[#allocation8 + $0x12c] sm:$0xf]
        %v1868 = vld [vmem:[#allocation8 + $0x130] sm:$0xf]
        %v1869 = vld [vmem:[#allocation8 + $0x134] sm:$0xf]
        %v1870 = vld [vmem:[#allocation8 + $0x138] sm:$0xf]
        %v1871 = vld [vmem:[#allocation8 + $0x13c] sm:$0xf]
        %v1872 = vld [vmem:[#allocation8 + $0x140] sm:$0xf]
        %v1873 = vld [vmem:[#allocation8 + $0x144] sm:$0xf]
        %v1874 = vld [vmem:[#allocation8 + $0x148] sm:$0xf]
        %v1875 = vld [vmem:[#allocation8 + $0x14c] sm:$0xf]
        %v1876 = vld [vmem:[#allocation8 + $0x150] sm:$0xf]
        %v1877 = vld [vmem:[#allocation8 + $0x154] sm:$0xf]
        %v1878 = vld [vmem:[#allocation8 + $0x158] sm:$0xf]
        %v1879 = vld [vmem:[#allocation8 + $0x15c] sm:$0xf]
        %v1880 = vld [vmem:[#allocation8 + $0x160] sm:$0xf]
        %v1881 = vld [vmem:[#allocation8 + $0x164] sm:$0xf]
        %v1882 = vld [vmem:[#allocation8 + $0x168] sm:$0xf]
        %v1883 = vld [vmem:[#allocation8 + $0x16c] sm:$0xf]
        %v1884 = vld [vmem:[#allocation8 + $0x170] sm:$0xf]
        %v1885 = vld [vmem:[#allocation8 + $0x174] sm:$0xf]
        %v1886 = vld [vmem:[#allocation8 + $0x178] sm:$0xf]
        %v1887 = vld [vmem:[#allocation8 + $0x17c] sm:$0xf]
        %v1888 = vld [vmem:[#allocation8 + $0x180] sm:$0xf]
        %v1889 = vld [vmem:[#allocation8 + $0x184] sm:$0xf]
        %v1890 = vld [vmem:[#allocation8 + $0x188] sm:$0xf]
        %v1891 = vld [vmem:[#allocation8 + $0x18c] sm:$0xf]
        %v1892 = vld [vmem:[#allocation8 + $0x190] sm:$0xf]
        %v1893 = vld [vmem:[#allocation8 + $0x194] sm:$0xf]
        %v1894 = vld [vmem:[#allocation8 + $0x198] sm:$0xf]
        %v1895 = vld [vmem:[#allocation8 + $0x19c] sm:$0xf]
        %v1896 = vld [vmem:[#allocation8 + $0x1a0] sm:$0xf]
        %v1897 = vld [vmem:[#allocation8 + $0x1a4] sm:$0xf]
        %v1898 = vld [vmem:[#allocation8 + $0x1a8] sm:$0xf]
        %v1899 = vld [vmem:[#allocation8 + $0x1ac] sm:$0xf]
        %v1900 = vld [vmem:[#allocation8 + $0x1b0] sm:$0xf]
        %v1901 = vld [vmem:[#allocation8 + $0x1b4] sm:$0xf]
        %v1902 = vld [vmem:[#allocation8 + $0x1b8] sm:$0xf]
        %v1903 = vld [vmem:[#allocation8 + $0x1bc] sm:$0xf]
        %v1904 = vld [vmem:[#allocation8 + $0x1c0] sm:$0xf]
        %v1905 = vld [vmem:[#allocation8 + $0x1c4] sm:$0xf]
        %v1906 = vld [vmem:[#allocation8 + $0x1c8] sm:$0xf]
        %v1907 = vld [vmem:[#allocation8 + $0x1cc] sm:$0xf]
        %v1908 = vld [vmem:[#allocation8 + $0x1d0] sm:$0xf]
        %v1909 = vld [vmem:[#allocation8 + $0x1d4] sm:$0xf]
        %v1910 = vld [vmem:[#allocation8 + $0x1d8] sm:$0xf]
        %v1911 = vld [vmem:[#allocation8 + $0x1dc] sm:$0xf]
        %v1912 = vld [vmem:[#allocation8 + $0x1e0] sm:$0xf]
        %v1913 = vld [vmem:[#allocation8 + $0x1e4] sm:$0xf]
        %v1914 = vld [vmem:[#allocation8 + $0x1e8] sm:$0xf]
        %v1915 = vld [vmem:[#allocation8 + $0x1ec] sm:$0xf]
        %v1916 = vld [vmem:[#allocation8 + $0x1f0] sm:$0xf]
        %v1917 = vld [vmem:[#allocation8 + $0x1f4] sm:$0xf]
        %v1918 = vld [vmem:[#allocation8 + $0x1f8] sm:$0xf]
        %v1919 = vld [vmem:[#allocation8 + $0x1fc] sm:$0xf]
        %v1920 = vld [vmem:[#allocation8 + $0x200] sm:$0xf]
        %v1921 = vld [vmem:[#allocation8 + $0x204] sm:$0xf]
        %v1922 = vld [vmem:[#allocation8 + $0x208] sm:$0xf]
        %v1923 = vld [vmem:[#allocation8 + $0x20c] sm:$0xf]
        %v1924 = vld [vmem:[#allocation8 + $0x210] sm:$0xf]
        %v1925 = vld [vmem:[#allocation8 + $0x214] sm:$0xf]
        %v1926 = vld [vmem:[#allocation8 + $0x218] sm:$0xf]
        %v1927 = vld [vmem:[#allocation8 + $0x21c] sm:$0xf]
        %v1928 = vld [vmem:[#allocation8 + $0x220] sm:$0xf]
        %v1929 = vld [vmem:[#allocation8 + $0x224] sm:$0xf]
        %v1930 = vld [vmem:[#allocation8 + $0x228] sm:$0xf]
        %v1931 = vld [vmem:[#allocation8 + $0x22c] sm:$0xf]
        %v1932 = vld [vmem:[#allocation8 + $0x230] sm:$0xf]
        %v1933 = vld [vmem:[#allocation8 + $0x234] sm:$0xf]
        %v1934 = vld [vmem:[#allocation8 + $0x238] sm:$0xf]
        %v1935 = vld [vmem:[#allocation8 + $0x23c] sm:$0xf]
        %v1936 = vld [vmem:[#allocation8 + $0x240] sm:$0xf]
        %v1937 = vld [vmem:[#allocation8 + $0x244] sm:$0xf]
        %v1938 = vld [vmem:[#allocation8 + $0x248] sm:$0xf]
        %v1939 = vld [vmem:[#allocation8 + $0x24c] sm:$0xf]
        %v1940 = vld [vmem:[#allocation8 + $0x250] sm:$0xf]
        %v1941 = vld [vmem:[#allocation8 + $0x254] sm:$0xf]
        %v1942 = vld [vmem:[#allocation8 + $0x258] sm:$0xf]
        %v1943 = vld [vmem:[#allocation8 + $0x25c] sm:$0xf]
        %v1944 = vld [vmem:[#allocation8 + $0x260] sm:$0xf]
        %v1945 = vld [vmem:[#allocation8 + $0x264] sm:$0xf]
        %v1946 = vld [vmem:[#allocation8 + $0x268] sm:$0xf]
        %v1947 = vld [vmem:[#allocation8 + $0x26c] sm:$0xf]
        %v1948 = vld [vmem:[#allocation8 + $0x270] sm:$0xf]
        %v1949 = vld [vmem:[#allocation8 + $0x274] sm:$0xf]
        %v1950 = vld [vmem:[#allocation8 + $0x278] sm:$0xf]
        %v1951 = vld [vmem:[#allocation8 + $0x27c] sm:$0xf]
        %v1952 = vld [vmem:[#allocation8 + $0x280] sm:$0xf]
        %v1953 = vld [vmem:[#allocation8 + $0x284] sm:$0xf]
        %v1954 = vld [vmem:[#allocation8 + $0x288] sm:$0xf]
        %v1955 = vld [vmem:[#allocation8 + $0x28c] sm:$0xf]
        %v1956 = vld [vmem:[#allocation8 + $0x290] sm:$0xf]
        %v1957 = vld [vmem:[#allocation8 + $0x294] sm:$0xf]
        %v1958 = vld [vmem:[#allocation8 + $0x298] sm:$0xf]
        %v1959 = vld [vmem:[#allocation8 + $0x29c] sm:$0xf]
        %v1960 = vld [vmem:[#allocation8 + $0x2a0] sm:$0xf]
        %v1961 = vld [vmem:[#allocation8 + $0x2a4] sm:$0xf]
        %v1962 = vld [vmem:[#allocation8 + $0x2a8] sm:$0xf]
        %v1963 = vld [vmem:[#allocation8 + $0x2ac] sm:$0xf]
        %v1964 = vld [vmem:[#allocation8 + $0x2b0] sm:$0xf]
        %v1965 = vld [vmem:[#allocation8 + $0x2b4] sm:$0xf]
        %v1966 = vld [vmem:[#allocation8 + $0x2b8] sm:$0xf]
        %v1967 = vld [vmem:[#allocation8 + $0x2bc] sm:$0xf]
        %v1968 = vld [vmem:[#allocation8 + $0x2c0] sm:$0xf]
        %v1969 = vld [vmem:[#allocation8 + $0x2c4] sm:$0xf]
        %v1970 = vld [vmem:[#allocation8 + $0x2c8] sm:$0xf]
        %v1971 = vld [vmem:[#allocation8 + $0x2cc] sm:$0xf]
        %v1972 = vld [vmem:[#allocation8 + $0x2d0] sm:$0xf]
        %v1973 = vld [vmem:[#allocation8 + $0x2d4] sm:$0xf]
        %v1974 = vld [vmem:[#allocation8 + $0x2d8] sm:$0xf]
        %v1975 = vld [vmem:[#allocation8 + $0x2dc] sm:$0xf]
        %v1976 = vld [vmem:[#allocation8 + $0x2e0] sm:$0xf]
        %v1977 = vld [vmem:[#allocation8 + $0x2e4] sm:$0xf]
        %v1978 = vld [vmem:[#allocation8 + $0x2e8] sm:$0xf]
        %v1979 = vld [vmem:[#allocation8 + $0x2ec] sm:$0xf]
        %v1980 = vld [vmem:[#allocation8 + $0x2f0] sm:$0xf]
        %v1981 = vld [vmem:[#allocation8 + $0x2f4] sm:$0xf]
        %v1982 = vld [vmem:[#allocation8 + $0x2f8] sm:$0xf]
        %v1983 = vld [vmem:[#allocation8 + $0x2fc] sm:$0xf]
        %v1984 = vld [vmem:[%s4] sm:$0x1]
        %v1986 = vlaneseq
        %v1987 = vshrl.u32 %v1986, 7
        %v1988 = vsub.s32 0, %v1987
        %v1989 = vrot.slane %v1984, %v1988
        %v1992 = vshrl.u32 %v1679, 16
        %v1994 = vrot.slane %v1992, 7
        %v1995 = vrot.slane %v1697, 7
        %v1996 = vor.u32 %v1995, %v1694
        %v1997 = vsel %vm612, %v1994, %v1996
        %v1999 = vshrl.u32 %v1696, 16
        %v2001 = vrot.slane %v1999, 7
        %v2003 = vshrl.u32 %v1704, 16
        %v2005 = vrot.slane %v2003, 7
        %v2006 = vshll.u32 %v1704, 16
        %v2008 = vor.u32 %v2005, %v2006
        %v2009 = vsel %vm612, %v2001, %v2008
        %v2011 = vshrl.u32 %v1711, 16
        %v2013 = vrot.slane %v2011, 7
        %v2015 = vshrl.u32 %v1713, 16
        %v2017 = vrot.slane %v2015, 7
        %v2018 = vshll.u32 %v1713, 16
        %v2020 = vor.u32 %v2017, %v2018
        %v2021 = vsel %vm612, %v2013, %v2020
        %v2023 = vshrl.u32 %v1719, 16
        %v2025 = vrot.slane %v2023, 7
        %v2027 = vshrl.u32 %v1721, 16
        %v2029 = vrot.slane %v2027, 7
        %v2030 = vshll.u32 %v1721, 16
        %v2032 = vor.u32 %v2029, %v2030
        %v2033 = vsel %vm612, %v2025, %v2032
        %v2035 = vshrl.u32 %v1727, 16
        %v2037 = vrot.slane %v2035, 7
        %v2039 = vshrl.u32 %v1735, 16
        %v2041 = vrot.slane %v2039, 7
        %v2042 = vshll.u32 %v1735, 16
        %v2044 = vor.u32 %v2041, %v2042
        %v2045 = vsel %vm612, %v2037, %v2044
        %v2047 = vshrl.u32 %v1747, 16
        %v2049 = vrot.slane %v2047, 7
        %v2051 = vshrl.u32 %v1749, 16
        %v2053 = vrot.slane %v2051, 7
        %v2054 = vshll.u32 %v1749, 16
        %v2056 = vor.u32 %v2053, %v2054
        %v2057 = vsel %vm612, %v2049, %v2056
        %v2059 = vshrl.u32 %v1754, 16
        %v2061 = vrot.slane %v2059, 7
        %v2063 = vshrl.u32 %v1756, 16
        %v2065 = vrot.slane %v2063, 7
        %v2066 = vshll.u32 %v1756, 16
        %v2068 = vor.u32 %v2065, %v2066
        %v2069 = vsel %vm612, %v2061, %v2068
        %v2071 = vshrl.u32 %v1762, 16
        %v2073 = vrot.slane %v2071, 7
        %v2075 = vshrl.u32 %v1775, 16
        %v2077 = vrot.slane %v2075, 7
        %v2078 = vshll.u32 %v1775, 16
        %v2080 = vor.u32 %v2077, %v2078
        %v2081 = vsel %vm612, %v2073, %v2080
        %v2083 = vshrl.u32 %v1787, 16
        %v2085 = vrot.slane %v2083, 7
        %v2087 = vshrl.u32 %v1789, 16
        %v2089 = vrot.slane %v2087, 7
        %v2090 = vshll.u32 %v1789, 16
        %v2092 = vor.u32 %v2089, %v2090
        %v2093 = vsel %vm612, %v2085, %v2092
        %v2094 = vrot.slane %v1705, 7
        %v2095 = vor.u32 %v2094, %v1701
        %v2096 = vsel %vm612, %v1995, %v2095
        %v2098 = vshrl.u32 %v1707, 16
        %v2100 = vrot.slane %v2098, 7
        %v2101 = vshll.u32 %v1707, 16
        %v2103 = vor.u32 %v2100, %v2101
        %v2104 = vsel %vm612, %v2005, %v2103
        %v2106 = vshrl.u32 %v1715, 16
        %v2108 = vrot.slane %v2106, 7
        %v2109 = vshll.u32 %v1715, 16
        %v2111 = vor.u32 %v2108, %v2109
        %v2112 = vsel %vm612, %v2017, %v2111
        %v2114 = vshrl.u32 %v1723, 16
        %v2116 = vrot.slane %v2114, 7
        %v2117 = vshll.u32 %v1723, 16
        %v2119 = vor.u32 %v2116, %v2117
        %v2120 = vsel %vm612, %v2029, %v2119
        %v2122 = vshrl.u32 %v1744, 16
        %v2124 = vrot.slane %v2122, 7
        %v2125 = vshll.u32 %v1744, 16
        %v2127 = vor.u32 %v2124, %v2125
        %v2128 = vsel %vm612, %v2041, %v2127
        %v2130 = vshrl.u32 %v1751, 16
        %v2132 = vrot.slane %v2130, 7
        %v2133 = vshll.u32 %v1751, 16
        %v2135 = vor.u32 %v2132, %v2133
        %v2136 = vsel %vm612, %v2053, %v2135
        %v2138 = vshrl.u32 %v1758, 16
        %v2140 = vrot.slane %v2138, 7
        %v2141 = vshll.u32 %v1758, 16
        %v2143 = vor.u32 %v2140, %v2141
        %v2144 = vsel %vm612, %v2065, %v2143
        %v2146 = vshrl.u32 %v1784, 16
        %v2148 = vrot.slane %v2146, 7
        %v2149 = vshll.u32 %v1784, 16
        %v2151 = vor.u32 %v2148, %v2149
        %v2152 = vsel %vm612, %v2077, %v2151
        %v2154 = vshrl.u32 %v1791, 16
        %v2156 = vrot.slane %v2154, 7
        %v2157 = vshll.u32 %v1791, 16
        %v2159 = vor.u32 %v2156, %v2157
        %v2160 = vsel %vm612, %v2089, %v2159
        %v2371 = vunpack.c.l.b16 %v1792
        %v2372 = vunpack.c.l.b16 %v1793
        %v2373 = vunpack.c.l.b16 %v1794
        %v2374 = vunpack.c.l.b16 %v1795
        %v2375 = vunpack.c.l.b16 %v1796
        %v2376 = vunpack.c.l.b16 %v1797
        %v2377 = vunpack.c.l.b16 %v1798
        %v2378 = vunpack.c.l.b16 %v1799
        %v2379 = vunpack.c.l.b16 %v1800
        %v2380 = vunpack.c.l.b16 %v1801
        %v2381 = vunpack.c.l.b16 %v1802
        %v2382 = vunpack.c.l.b16 %v1803
        %v2383 = vunpack.c.l.b16 %v1804
        %v2384 = vunpack.c.l.b16 %v1805
        %v2385 = vunpack.c.l.b16 %v1806
        %v2386 = vunpack.c.l.b16 %v1807
        %v2387 = vunpack.c.l.b16 %v1808
        %v2388 = vunpack.c.l.b16 %v1809
        %v2389 = vunpack.c.l.b16 %v1810
        %v2390 = vunpack.c.l.b16 %v1811
        %v2391 = vunpack.c.l.b16 %v1812
        %v2392 = vunpack.c.l.b16 %v1813
        %v2393 = vunpack.c.l.b16 %v1814
        %v2394 = vunpack.c.l.b16 %v1815
        %v2395 = vunpack.c.l.b16 %v1816
        %v2396 = vunpack.c.l.b16 %v1817
        %v2397 = vunpack.c.l.b16 %v1818
        %v2398 = vunpack.c.l.b16 %v1819
        %v2399 = vunpack.c.l.b16 %v1820
        %v2400 = vunpack.c.l.b16 %v1821
        %v2401 = vunpack.c.l.b16 %v1822
        %v2402 = vunpack.c.l.b16 %v1823
        %v2403 = vunpack.c.l.b16 %v1824
        %v2404 = vunpack.c.l.b16 %v1825
        %v2405 = vunpack.c.l.b16 %v1826
        %v2406 = vunpack.c.l.b16 %v1827
        %v2407 = vunpack.c.l.b16 %v1828
        %v2408 = vunpack.c.l.b16 %v1829
        %v2409 = vunpack.c.l.b16 %v1830
        %v2410 = vunpack.c.l.b16 %v1831
        %v2411 = vunpack.c.l.b16 %v1832
        %v2412 = vunpack.c.l.b16 %v1833
        %v2413 = vunpack.c.l.b16 %v1834
        %v2414 = vunpack.c.l.b16 %v1835
        %v2415 = vunpack.c.l.b16 %v1836
        %v2416 = vunpack.c.l.b16 %v1837
        %v2417 = vunpack.c.l.b16 %v1838
        %v2418 = vunpack.c.l.b16 %v1839
        %v2419 = vunpack.c.l.b16 %v1840
        %v2420 = vunpack.c.l.b16 %v1841
        %v2421 = vunpack.c.l.b16 %v1842
        %v2422 = vunpack.c.l.b16 %v1843
        %v2423 = vunpack.c.l.b16 %v1844
        %v2424 = vunpack.c.l.b16 %v1845
        %v2425 = vunpack.c.l.b16 %v1846
        %v2426 = vunpack.c.l.b16 %v1847
        %v2427 = vunpack.c.l.b16 %v1848
        %v2428 = vunpack.c.l.b16 %v1849
        %v2429 = vunpack.c.l.b16 %v1850
        %v2430 = vunpack.c.l.b16 %v1851
        %v2431 = vunpack.c.l.b16 %v1852
        %v2432 = vunpack.c.l.b16 %v1853
        %v2433 = vunpack.c.l.b16 %v1854
        %v2434 = vunpack.c.l.b16 %v1855
        %v2435 = vunpack.c.l.b16 %v1856
        %v2436 = vunpack.c.l.b16 %v1857
        %v2437 = vunpack.c.l.b16 %v1858
        %v2438 = vunpack.c.l.b16 %v1859
        %v2439 = vunpack.c.l.b16 %v1860
        %v2440 = vunpack.c.l.b16 %v1861
        %v2441 = vunpack.c.l.b16 %v1862
        %v2442 = vunpack.c.l.b16 %v1863
        %v2443 = vunpack.c.l.b16 %v1864
        %v2444 = vunpack.c.l.b16 %v1865
        %v2445 = vunpack.c.l.b16 %v1866
        %v2446 = vunpack.c.l.b16 %v1867
        %v2447 = vunpack.c.l.b16 %v1868
        %v2448 = vunpack.c.l.b16 %v1869
        %v2449 = vunpack.c.l.b16 %v1870
        %v2450 = vunpack.c.l.b16 %v1871
        %v2451 = vunpack.c.l.b16 %v1872
        %v2452 = vunpack.c.l.b16 %v1873
        %v2453 = vunpack.c.l.b16 %v1874
        %v2454 = vunpack.c.l.b16 %v1875
        %v2455 = vunpack.c.l.b16 %v1876
        %v2456 = vunpack.c.l.b16 %v1877
        %v2457 = vunpack.c.l.b16 %v1878
        %v2458 = vunpack.c.l.b16 %v1879
        %v2459 = vunpack.c.l.b16 %v1880
        %v2460 = vunpack.c.l.b16 %v1881
        %v2461 = vunpack.c.l.b16 %v1882
        %v2462 = vunpack.c.l.b16 %v1883
        %v2463 = vunpack.c.l.b16 %v1884
        %v2464 = vunpack.c.l.b16 %v1885
        %v2465 = vunpack.c.l.b16 %v1886
        %v2466 = vunpack.c.l.b16 %v1887
        %v2467 = vunpack.c.l.b16 %v1888
        %v2468 = vunpack.c.l.b16 %v1889
        %v2469 = vunpack.c.l.b16 %v1890
        %v2470 = vunpack.c.l.b16 %v1891
        %v2471 = vunpack.c.l.b16 %v1892
        %v2472 = vunpack.c.l.b16 %v1893
        %v2473 = vunpack.c.l.b16 %v1894
        %v2474 = vunpack.c.l.b16 %v1895
        %v2475 = vunpack.c.l.b16 %v1896
        %v2476 = vunpack.c.l.b16 %v1897
        %v2477 = vunpack.c.l.b16 %v1898
        %v2478 = vunpack.c.l.b16 %v1899
        %v2479 = vunpack.c.l.b16 %v1900
        %v2480 = vunpack.c.l.b16 %v1901
        %v2481 = vunpack.c.l.b16 %v1902
        %v2482 = vunpack.c.l.b16 %v1903
        %v2483 = vunpack.c.l.b16 %v1904
        %v2484 = vunpack.c.l.b16 %v1905
        %v2485 = vunpack.c.l.b16 %v1906
        %v2486 = vunpack.c.l.b16 %v1907
        %v2487 = vunpack.c.l.b16 %v1908
        %v2488 = vunpack.c.l.b16 %v1909
        %v2489 = vunpack.c.l.b16 %v1910
        %v2490 = vunpack.c.l.b16 %v1911
        %v2491 = vunpack.c.l.b16 %v1912
        %v2492 = vunpack.c.l.b16 %v1913
        %v2493 = vunpack.c.l.b16 %v1914
        %v2494 = vunpack.c.l.b16 %v1915
        %v2495 = vunpack.c.l.b16 %v1916
        %v2496 = vunpack.c.l.b16 %v1917
        %v2497 = vunpack.c.l.b16 %v1918
        %v2498 = vunpack.c.l.b16 %v1919
        %v2499 = vunpack.c.l.b16 %v1920
        %v2500 = vunpack.c.l.b16 %v1921
        %v2501 = vunpack.c.l.b16 %v1922
        %v2502 = vunpack.c.l.b16 %v1923
        %v2503 = vunpack.c.l.b16 %v1924
        %v2504 = vunpack.c.l.b16 %v1925
        %v2505 = vunpack.c.l.b16 %v1926
        %v2506 = vunpack.c.l.b16 %v1927
        %v2507 = vunpack.c.l.b16 %v1928
        %v2508 = vunpack.c.l.b16 %v1929
        %v2509 = vunpack.c.l.b16 %v1930
        %v2510 = vunpack.c.l.b16 %v1931
        %v2511 = vunpack.c.l.b16 %v1932
        %v2512 = vunpack.c.l.b16 %v1933
        %v2513 = vunpack.c.l.b16 %v1934
        %v2514 = vunpack.c.l.b16 %v1935
        %v2515 = vunpack.c.l.b16 %v1936
        %v2516 = vunpack.c.l.b16 %v1937
        %v2517 = vunpack.c.l.b16 %v1938
        %v2518 = vunpack.c.l.b16 %v1939
        %v2519 = vunpack.c.l.b16 %v1940
        %v2520 = vunpack.c.l.b16 %v1941
        %v2521 = vunpack.c.l.b16 %v1942
        %v2522 = vunpack.c.l.b16 %v1943
        %v2523 = vunpack.c.l.b16 %v1944
        %v2524 = vunpack.c.l.b16 %v1945
        %v2525 = vunpack.c.l.b16 %v1946
        %v2526 = vunpack.c.l.b16 %v1947
        %v2527 = vunpack.c.l.b16 %v1948
        %v2528 = vunpack.c.l.b16 %v1949
        %v2529 = vunpack.c.l.b16 %v1950
        %v2530 = vunpack.c.l.b16 %v1951
        %v2531 = vunpack.c.l.b16 %v1952
        %v2532 = vunpack.c.l.b16 %v1953
        %v2533 = vunpack.c.l.b16 %v1954
        %v2534 = vunpack.c.l.b16 %v1955
        %v2535 = vunpack.c.l.b16 %v1956
        %v2536 = vunpack.c.l.b16 %v1957
        %v2537 = vunpack.c.l.b16 %v1958
        %v2538 = vunpack.c.l.b16 %v1959
        %v2539 = vunpack.c.l.b16 %v1960
        %v2540 = vunpack.c.l.b16 %v1961
        %v2541 = vunpack.c.l.b16 %v1962
        %v2542 = vunpack.c.l.b16 %v1963
        %v2543 = vunpack.c.l.b16 %v1964
        %v2544 = vunpack.c.l.b16 %v1965
        %v2545 = vunpack.c.l.b16 %v1966
        %v2546 = vunpack.c.l.b16 %v1967
        %v2547 = vunpack.c.l.b16 %v1968
        %v2548 = vunpack.c.l.b16 %v1969
        %v2549 = vunpack.c.l.b16 %v1970
        %v2550 = vunpack.c.l.b16 %v1971
        %v2551 = vunpack.c.l.b16 %v1972
        %v2552 = vunpack.c.l.b16 %v1973
        %v2553 = vunpack.c.l.b16 %v1974
        %v2554 = vunpack.c.l.b16 %v1975
        %v2555 = vunpack.c.l.b16 %v1976
        %v2556 = vunpack.c.l.b16 %v1977
        %v2557 = vunpack.c.l.b16 %v1978
        %v2558 = vunpack.c.l.b16 %v1979
        %v2559 = vunpack.c.l.b16 %v1980
        %v2560 = vunpack.c.l.b16 %v1981
        %v2561 = vunpack.c.l.b16 %v1982
        %v2562 = vunpack.c.l.b16 %v1983
        %v2563 = vpack.c.b16 %v2372, %v2371
        %v2564 = vpack.c.b16 %v2374, %v2373
        %v2565 = vpack.c.b16 %v2376, %v2375
        %v2566 = vpack.c.b16 %v2378, %v2377
        %v2567 = vpack.c.b16 %v2380, %v2379
        %v2568 = vpack.c.b16 %v2382, %v2381
        %v2569 = vpack.c.b16 %v2384, %v2383
        %v2570 = vpack.c.b16 %v2386, %v2385
        %v2571 = vpack.c.b16 %v2388, %v2387
        %v2572 = vpack.c.b16 %v2390, %v2389
        %v2573 = vpack.c.b16 %v2392, %v2391
        %v2574 = vpack.c.b16 %v2394, %v2393
        %v2575 = vpack.c.b16 %v2396, %v2395
        %v2576 = vpack.c.b16 %v2398, %v2397
        %v2577 = vpack.c.b16 %v2400, %v2399
        %v2578 = vpack.c.b16 %v2402, %v2401
        %v2579 = vpack.c.b16 %v2404, %v2403
        %v2580 = vpack.c.b16 %v2406, %v2405
        %v2581 = vpack.c.b16 %v2408, %v2407
        %v2582 = vpack.c.b16 %v2410, %v2409
        %v2583 = vpack.c.b16 %v2412, %v2411
        %v2584 = vpack.c.b16 %v2414, %v2413
        %v2585 = vpack.c.b16 %v2416, %v2415
        %v2586 = vpack.c.b16 %v2418, %v2417
        %v2587 = vpack.c.b16 %v2420, %v2419
        %v2588 = vpack.c.b16 %v2422, %v2421
        %v2589 = vpack.c.b16 %v2424, %v2423
        %v2590 = vpack.c.b16 %v2426, %v2425
        %v2591 = vpack.c.b16 %v2428, %v2427
        %v2592 = vpack.c.b16 %v2430, %v2429
        %v2593 = vpack.c.b16 %v2432, %v2431
        %v2594 = vpack.c.b16 %v2434, %v2433
        %v2595 = vpack.c.b16 %v2436, %v2435
        %v2596 = vpack.c.b16 %v2438, %v2437
        %v2597 = vpack.c.b16 %v2440, %v2439
        %v2598 = vpack.c.b16 %v2442, %v2441
        %v2599 = vpack.c.b16 %v2444, %v2443
        %v2600 = vpack.c.b16 %v2446, %v2445
        %v2601 = vpack.c.b16 %v2448, %v2447
        %v2602 = vpack.c.b16 %v2450, %v2449
        %v2603 = vpack.c.b16 %v2452, %v2451
        %v2604 = vpack.c.b16 %v2454, %v2453
        %v2605 = vpack.c.b16 %v2456, %v2455
        %v2606 = vpack.c.b16 %v2458, %v2457
        %v2607 = vpack.c.b16 %v2460, %v2459
        %v2608 = vpack.c.b16 %v2462, %v2461
        %v2609 = vpack.c.b16 %v2464, %v2463
        %v2610 = vpack.c.b16 %v2466, %v2465
        %v2611 = vpack.c.b16 %v2468, %v2467
        %v2612 = vpack.c.b16 %v2470, %v2469
        %v2613 = vpack.c.b16 %v2472, %v2471
        %v2614 = vpack.c.b16 %v2474, %v2473
        %v2615 = vpack.c.b16 %v2476, %v2475
        %v2616 = vpack.c.b16 %v2478, %v2477
        %v2617 = vpack.c.b16 %v2480, %v2479
        %v2618 = vpack.c.b16 %v2482, %v2481
        %v2619 = vpack.c.b16 %v2484, %v2483
        %v2620 = vpack.c.b16 %v2486, %v2485
        %v2621 = vpack.c.b16 %v2488, %v2487
        %v2622 = vpack.c.b16 %v2490, %v2489
        %v2623 = vpack.c.b16 %v2492, %v2491
        %v2624 = vpack.c.b16 %v2494, %v2493
        %v2625 = vpack.c.b16 %v2496, %v2495
        %v2626 = vpack.c.b16 %v2498, %v2497
        %v2627 = vpack.c.b16 %v2500, %v2499
        %v2628 = vpack.c.b16 %v2502, %v2501
        %v2629 = vpack.c.b16 %v2504, %v2503
        %v2630 = vpack.c.b16 %v2506, %v2505
        %v2631 = vpack.c.b16 %v2508, %v2507
        %v2632 = vpack.c.b16 %v2510, %v2509
        %v2633 = vpack.c.b16 %v2512, %v2511
        %v2634 = vpack.c.b16 %v2514, %v2513
        %v2635 = vpack.c.b16 %v2516, %v2515
        %v2636 = vpack.c.b16 %v2518, %v2517
        %v2637 = vpack.c.b16 %v2520, %v2519
        %v2638 = vpack.c.b16 %v2522, %v2521
        %v2639 = vpack.c.b16 %v2524, %v2523
        %v2640 = vpack.c.b16 %v2526, %v2525
        %v2641 = vpack.c.b16 %v2528, %v2527
        %v2642 = vpack.c.b16 %v2530, %v2529
        %v2643 = vpack.c.b16 %v2532, %v2531
        %v2644 = vpack.c.b16 %v2534, %v2533
        %v2645 = vpack.c.b16 %v2536, %v2535
        %v2646 = vpack.c.b16 %v2538, %v2537
        %v2647 = vpack.c.b16 %v2540, %v2539
        %v2648 = vpack.c.b16 %v2542, %v2541
        %v2649 = vpack.c.b16 %v2544, %v2543
        %v2650 = vpack.c.b16 %v2546, %v2545
        %v2651 = vpack.c.b16 %v2548, %v2547
        %v2652 = vpack.c.b16 %v2550, %v2549
        %v2653 = vpack.c.b16 %v2552, %v2551
        %v2654 = vpack.c.b16 %v2554, %v2553
        %v2655 = vpack.c.b16 %v2556, %v2555
        %v2656 = vpack.c.b16 %v2558, %v2557
        %v2657 = vpack.c.b16 %v2560, %v2559
        %v2658 = vpack.c.b16 %v2562, %v2561
        %2755 = vmatprep.subr.bf16.mxu0 0
        %2756 = vmatpush1.bf16.msra.mxu0 %v2563
        %2757 = vmatprep.subr.bf16.mxu0 0
        %2758 = vmatpush1.bf16.msra.mxu0 %v2564
        %2759 = vmatprep.subr.bf16.mxu0 0
        %2760 = vmatpush1.bf16.msra.mxu0 %v2565
        %2761 = vmatprep.subr.bf16.mxu0 0
        %2762 = vmatpush1.bf16.msra.mxu0 %v2566
        %2763 = vmatprep.subr.bf16.mxu0 0
        %2764 = vmatpush1.bf16.msra.mxu0 %v2567
        %2765 = vmatprep.subr.bf16.mxu0 0
        %2766 = vmatpush1.bf16.msra.mxu0 %v2568
        %2767 = vmatprep.subr.bf16.mxu0 0
        %2768 = vmatpush1.bf16.msra.mxu0 %v2569
        %2769 = vmatprep.subr.bf16.mxu0 0
        %2770 = vmatpush1.bf16.msra.mxu0 %v2570
        %2771 = vmatprep.subr.bf16.mxu0 0
        %2772 = vmatpush1.bf16.msra.mxu0 %v2571
        %2773 = vmatprep.subr.bf16.mxu0 0
        %2774 = vmatpush1.bf16.msra.mxu0 %v2572
        %2775 = vmatprep.subr.bf16.mxu0 0
        %2776 = vmatpush1.bf16.msra.mxu0 %v2573
        %2777 = vmatprep.subr.bf16.mxu0 0
        %2778 = vmatpush1.bf16.msra.mxu0 %v2574
        %2779 = vmatprep.subr.bf16.mxu0 0
        %2780 = vmatpush1.bf16.msra.mxu0 %v2575
        %2781 = vmatprep.subr.bf16.mxu0 0
        %2782 = vmatpush1.bf16.msra.mxu0 %v2576
        %2783 = vmatprep.subr.bf16.mxu0 0
        %2784 = vmatpush1.bf16.msra.mxu0 %v2577
        %2785 = vmatprep.subr.bf16.mxu0 0
        %2786 = vmatpush1.bf16.msra.mxu0 %v2578
        %2787 = vmatprep.mubr.bf16.mxu0 %v2009
        %2788 = vmatmul.mubr.bf16.gmra.mrb[0].mxu0 %v1997
        %v2789 = vpop.f32.mrb[0].mxu0
        %v2790 = vadd.f32 %v1989, %v2789
        %v2791 = vpop.f32.mrb[0].mxu0
        %v2792 = vpop.f32.mrb[0].mxu0
        %v2793 = vadd.f32 %v1989, %v2792
        %v2794 = vpop.f32.mrb[0].mxu0
        %2795 = vmatprep.mubr.bf16.mxu0 %v2104
        %2796 = vmatmul.mubr.bf16.gmra.mrb[0].mxu0 %v2096
        %v2797 = vpop.f32.mrb[0].mxu0
        %v2798 = vadd.f32 %v1989, %v2797
        %v2799 = vpop.f32.mrb[0].mxu0
        %v2800 = vpop.f32.mrb[0].mxu0
        %v2801 = vadd.f32 %v1989, %v2800
        %v2802 = vpop.f32.mrb[0].mxu0
        %2803 = vdwg.mxu0
        %2804 = vmatprep.subr.bf16.mxu0 0
        %2805 = vmatpush1.bf16.msra.mxu0 %v2579
        %2806 = vmatprep.subr.bf16.mxu0 0
        %2807 = vmatpush1.bf16.msra.mxu0 %v2580
        %2808 = vmatprep.subr.bf16.mxu0 0
        %2809 = vmatpush1.bf16.msra.mxu0 %v2581
        %2810 = vmatprep.subr.bf16.mxu0 0
        %2811 = vmatpush1.bf16.msra.mxu0 %v2582
        %2812 = vmatprep.subr.bf16.mxu0 0
        %2813 = vmatpush1.bf16.msra.mxu0 %v2583
        %2814 = vmatprep.subr.bf16.mxu0 0
        %2815 = vmatpush1.bf16.msra.mxu0 %v2584
        %2816 = vmatprep.subr.bf16.mxu0 0
        %2817 = vmatpush1.bf16.msra.mxu0 %v2585
        %2818 = vmatprep.subr.bf16.mxu0 0
        %2819 = vmatpush1.bf16.msra.mxu0 %v2586
        %2820 = vmatprep.subr.bf16.mxu0 0
        %2821 = vmatpush1.bf16.msra.mxu0 %v2587
        %2822 = vmatprep.subr.bf16.mxu0 0
        %2823 = vmatpush1.bf16.msra.mxu0 %v2588
        %2824 = vmatprep.subr.bf16.mxu0 0
        %2825 = vmatpush1.bf16.msra.mxu0 %v2589
        %2826 = vmatprep.subr.bf16.mxu0 0
        %2827 = vmatpush1.bf16.msra.mxu0 %v2590
        %2828 = vmatprep.subr.bf16.mxu0 0
        %2829 = vmatpush1.bf16.msra.mxu0 %v2591
        %2830 = vmatprep.subr.bf16.mxu0 0
        %2831 = vmatpush1.bf16.msra.mxu0 %v2592
        %2832 = vmatprep.subr.bf16.mxu0 0
        %2833 = vmatpush1.bf16.msra.mxu0 %v2593
        %2834 = vmatprep.subr.bf16.mxu0 0
        %2835 = vmatpush1.bf16.msra.mxu0 %v2594
        %2836 = vmatprep.mubr.bf16.mxu0 %v2033
        %2837 = vmatmul.mubr.bf16.gmra.mrb[0].mxu0 %v2021
        %v2838 = vpop.f32.mrb[0].mxu0
        %v2839 = vadd.f32 %v2790, %v2838
        %v2840 = vpop.f32.mrb[0].mxu0
        %v2841 = vpop.f32.mrb[0].mxu0
        %v2842 = vadd.f32 %v2793, %v2841
        %v2843 = vpop.f32.mrb[0].mxu0
        %2844 = vmatprep.mubr.bf16.mxu0 %v2120
        %2845 = vmatmul.mubr.bf16.gmra.mrb[0].mxu0 %v2112
        %v2846 = vpop.f32.mrb[0].mxu0
        %v2847 = vadd.f32 %v2798, %v2846
        %v2848 = vpop.f32.mrb[0].mxu0
        %v2849 = vpop.f32.mrb[0].mxu0
        %v2850 = vadd.f32 %v2801, %v2849
        %v2851 = vpop.f32.mrb[0].mxu0
        %2852 = vdwg.mxu0
        %2853 = vmatprep.subr.bf16.mxu0 0
        %2854 = vmatpush1.bf16.msra.mxu0 %v2595
        %2855 = vmatprep.subr.bf16.mxu0 0
        %2856 = vmatpush1.bf16.msra.mxu0 %v2596
        %2857 = vmatprep.subr.bf16.mxu0 0
        %2858 = vmatpush1.bf16.msra.mxu0 %v2597
        %2859 = vmatprep.subr.bf16.mxu0 0
        %2860 = vmatpush1.bf16.msra.mxu0 %v2598
        %2861 = vmatprep.subr.bf16.mxu0 0
        %2862 = vmatpush1.bf16.msra.mxu0 %v2599
        %2863 = vmatprep.subr.bf16.mxu0 0
        %2864 = vmatpush1.bf16.msra.mxu0 %v2600
        %2865 = vmatprep.subr.bf16.mxu0 0
        %2866 = vmatpush1.bf16.msra.mxu0 %v2601
        %2867 = vmatprep.subr.bf16.mxu0 0
        %2868 = vmatpush1.bf16.msra.mxu0 %v2602
        %2869 = vmatprep.subr.bf16.mxu0 0
        %2870 = vmatpush1.bf16.msra.mxu0 %v2603
        %2871 = vmatprep.subr.bf16.mxu0 0
        %2872 = vmatpush1.bf16.msra.mxu0 %v2604
        %2873 = vmatprep.subr.bf16.mxu0 0
        %2874 = vmatpush1.bf16.msra.mxu0 %v2605
        %2875 = vmatprep.subr.bf16.mxu0 0
        %2876 = vmatpush1.bf16.msra.mxu0 %v2606
        %2877 = vmatprep.subr.bf16.mxu0 0
        %2878 = vmatpush1.bf16.msra.mxu0 %v2607
        %2879 = vmatprep.subr.bf16.mxu0 0
        %2880 = vmatpush1.bf16.msra.mxu0 %v2608
        %2881 = vmatprep.subr.bf16.mxu0 0
        %2882 = vmatpush1.bf16.msra.mxu0 %v2609
        %2883 = vmatprep.subr.bf16.mxu0 0
        %2884 = vmatpush1.bf16.msra.mxu0 %v2610
        %2885 = vmatprep.mubr.bf16.mxu0 %v2057
        %2886 = vmatmul.mubr.bf16.gmra.mrb[0].mxu0 %v2045
        %v2887 = vpop.f32.mrb[0].mxu0
        %v2888 = vadd.f32 %v2839, %v2887
        %v2889 = vpop.f32.mrb[0].mxu0
        %v2890 = vpop.f32.mrb[0].mxu0
        %v2891 = vadd.f32 %v2842, %v2890
        %v2892 = vpop.f32.mrb[0].mxu0
        %2893 = vmatprep.mubr.bf16.mxu0 %v2136
        %2894 = vmatmul.mubr.bf16.gmra.mrb[0].mxu0 %v2128
        %v2895 = vpop.f32.mrb[0].mxu0
        %v2896 = vadd.f32 %v2847, %v2895
        %v2897 = vpop.f32.mrb[0].mxu0
        %v2898 = vpop.f32.mrb[0].mxu0
        %v2899 = vadd.f32 %v2850, %v2898
        %v2900 = vpop.f32.mrb[0].mxu0
        %2901 = vdwg.mxu0
        %2902 = vmatprep.subr.bf16.mxu0 0
        %2903 = vmatpush1.bf16.msra.mxu0 %v2611
        %2904 = vmatprep.subr.bf16.mxu0 0
        %2905 = vmatpush1.bf16.msra.mxu0 %v2612
        %2906 = vmatprep.subr.bf16.mxu0 0
        %2907 = vmatpush1.bf16.msra.mxu0 %v2613
        %2908 = vmatprep.subr.bf16.mxu0 0
        %2909 = vmatpush1.bf16.msra.mxu0 %v2614
        %2910 = vmatprep.subr.bf16.mxu0 0
        %2911 = vmatpush1.bf16.msra.mxu0 %v2615
        %2912 = vmatprep.subr.bf16.mxu0 0
        %2913 = vmatpush1.bf16.msra.mxu0 %v2616
        %2914 = vmatprep.subr.bf16.mxu0 0
        %2915 = vmatpush1.bf16.msra.mxu0 %v2617
        %2916 = vmatprep.subr.bf16.mxu0 0
        %2917 = vmatpush1.bf16.msra.mxu0 %v2618
        %2918 = vmatprep.subr.bf16.mxu0 0
        %2919 = vmatpush1.bf16.msra.mxu0 %v2619
        %2920 = vmatprep.subr.bf16.mxu0 0
        %2921 = vmatpush1.bf16.msra.mxu0 %v2620
        %2922 = vmatprep.subr.bf16.mxu0 0
        %2923 = vmatpush1.bf16.msra.mxu0 %v2621
        %2924 = vmatprep.subr.bf16.mxu0 0
        %2925 = vmatpush1.bf16.msra.mxu0 %v2622
        %2926 = vmatprep.subr.bf16.mxu0 0
        %2927 = vmatpush1.bf16.msra.mxu0 %v2623
        %2928 = vmatprep.subr.bf16.mxu0 0
        %2929 = vmatpush1.bf16.msra.mxu0 %v2624
        %2930 = vmatprep.subr.bf16.mxu0 0
        %2931 = vmatpush1.bf16.msra.mxu0 %v2625
        %2932 = vmatprep.subr.bf16.mxu0 0
        %2933 = vmatpush1.bf16.msra.mxu0 %v2626
        %2934 = vmatprep.mubr.bf16.mxu0 %v2009
        %2935 = vmatmul.mubr.bf16.gmra.mrb[0].mxu0 %v1997
        %v2936 = vpop.f32.mrb[0].mxu0
        %v2937 = vadd.f32 %v2888, %v2936
        %v2938 = vpop.f32.mrb[0].mxu0
        %v2939 = vpop.f32.mrb[0].mxu0
        %v2940 = vadd.f32 %v2891, %v2939
        %v2941 = vpop.f32.mrb[0].mxu0
        %2942 = vmatprep.mubr.bf16.mxu0 %v2104
        %2943 = vmatmul.mubr.bf16.gmra.mrb[0].mxu0 %v2096
        %v2944 = vpop.f32.mrb[0].mxu0
        %v2945 = vadd.f32 %v2896, %v2944
        %v2946 = vpop.f32.mrb[0].mxu0
        %v2947 = vpop.f32.mrb[0].mxu0
        %v2948 = vadd.f32 %v2899, %v2947
        %v2949 = vpop.f32.mrb[0].mxu0
        %2950 = vdwg.mxu0
        %2951 = vmatprep.subr.bf16.mxu0 0
        %2952 = vmatpush1.bf16.msra.mxu0 %v2627
        %2953 = vmatprep.subr.bf16.mxu0 0
        %2954 = vmatpush1.bf16.msra.mxu0 %v2628
        %2955 = vmatprep.subr.bf16.mxu0 0
        %2956 = vmatpush1.bf16.msra.mxu0 %v2629
        %2957 = vmatprep.subr.bf16.mxu0 0
        %2958 = vmatpush1.bf16.msra.mxu0 %v2630
        %2959 = vmatprep.subr.bf16.mxu0 0
        %2960 = vmatpush1.bf16.msra.mxu0 %v2631
        %2961 = vmatprep.subr.bf16.mxu0 0
        %2962 = vmatpush1.bf16.msra.mxu0 %v2632
        %2963 = vmatprep.subr.bf16.mxu0 0
        %2964 = vmatpush1.bf16.msra.mxu0 %v2633
        %2965 = vmatprep.subr.bf16.mxu0 0
        %2966 = vmatpush1.bf16.msra.mxu0 %v2634
        %2967 = vmatprep.subr.bf16.mxu0 0
        %2968 = vmatpush1.bf16.msra.mxu0 %v2635
        %2969 = vmatprep.subr.bf16.mxu0 0
        %2970 = vmatpush1.bf16.msra.mxu0 %v2636
        %2971 = vmatprep.subr.bf16.mxu0 0
        %2972 = vmatpush1.bf16.msra.mxu0 %v2637
        %2973 = vmatprep.subr.bf16.mxu0 0
        %2974 = vmatpush1.bf16.msra.mxu0 %v2638
        %2975 = vmatprep.subr.bf16.mxu0 0
        %2976 = vmatpush1.bf16.msra.mxu0 %v2639
        %2977 = vmatprep.subr.bf16.mxu0 0
        %2978 = vmatpush1.bf16.msra.mxu0 %v2640
        %2979 = vmatprep.subr.bf16.mxu0 0
        %2980 = vmatpush1.bf16.msra.mxu0 %v2641
        %2981 = vmatprep.subr.bf16.mxu0 0
        %2982 = vmatpush1.bf16.msra.mxu0 %v2642
        %2983 = vmatprep.mubr.bf16.mxu0 %v2069
        %2984 = vmatmul.mubr.bf16.gmra.mrb[0].mxu0 %v2021
        %v2985 = vpop.f32.mrb[0].mxu0
        %v2986 = vadd.f32 %v2937, %v2985
        %v2987 = vpop.f32.mrb[0].mxu0
        %v2988 = vpop.f32.mrb[0].mxu0
        %v2989 = vadd.f32 %v2940, %v2988
        %v2990 = vpop.f32.mrb[0].mxu0
        %2991 = vmatprep.mubr.bf16.mxu0 %v2144
        %2992 = vmatmul.mubr.bf16.gmra.mrb[0].mxu0 %v2112
        %v2993 = vpop.f32.mrb[0].mxu0
        %v2994 = vadd.f32 %v2945, %v2993
        %v2995 = vpop.f32.mrb[0].mxu0
        %v2996 = vpop.f32.mrb[0].mxu0
        %v2997 = vadd.f32 %v2948, %v2996
        %v2998 = vpop.f32.mrb[0].mxu0
        %2999 = vdwg.mxu0
        %3000 = vmatprep.subr.bf16.mxu0 0
        %3001 = vmatpush1.bf16.msra.mxu0 %v2643
        %3002 = vmatprep.subr.bf16.mxu0 0
        %3003 = vmatpush1.bf16.msra.mxu0 %v2644
        %3004 = vmatprep.subr.bf16.mxu0 0
        %3005 = vmatpush1.bf16.msra.mxu0 %v2645
        %3006 = vmatprep.subr.bf16.mxu0 0
        %3007 = vmatpush1.bf16.msra.mxu0 %v2646
        %3008 = vmatprep.subr.bf16.mxu0 0
        %3009 = vmatpush1.bf16.msra.mxu0 %v2647
        %3010 = vmatprep.subr.bf16.mxu0 0
        %3011 = vmatpush1.bf16.msra.mxu0 %v2648
        %3012 = vmatprep.subr.bf16.mxu0 0
        %3013 = vmatpush1.bf16.msra.mxu0 %v2649
        %3014 = vmatprep.subr.bf16.mxu0 0
        %3015 = vmatpush1.bf16.msra.mxu0 %v2650
        %3016 = vmatprep.subr.bf16.mxu0 0
        %3017 = vmatpush1.bf16.msra.mxu0 %v2651
        %3018 = vmatprep.subr.bf16.mxu0 0
        %3019 = vmatpush1.bf16.msra.mxu0 %v2652
        %3020 = vmatprep.subr.bf16.mxu0 0
        %3021 = vmatpush1.bf16.msra.mxu0 %v2653
        %3022 = vmatprep.subr.bf16.mxu0 0
        %3023 = vmatpush1.bf16.msra.mxu0 %v2654
        %3024 = vmatprep.subr.bf16.mxu0 0
        %3025 = vmatpush1.bf16.msra.mxu0 %v2655
        %3026 = vmatprep.subr.bf16.mxu0 0
        %3027 = vmatpush1.bf16.msra.mxu0 %v2656
        %3028 = vmatprep.subr.bf16.mxu0 0
        %3029 = vmatpush1.bf16.msra.mxu0 %v2657
        %3030 = vmatprep.subr.bf16.mxu0 0
        %3031 = vmatpush1.bf16.msra.mxu0 %v2658
        %3032 = vmatprep.mubr.bf16.mxu0 %v2093
        %3033 = vmatmul.mubr.bf16.gmra.mrb[0].mxu0 %v2081
        %v3034 = vpop.f32.mrb[0].mxu0
        %v3035 = vadd.f32 %v2986, %v3034
        %v3036 = vpop.f32.mrb[0].mxu0
        %v3037 = vpop.f32.mrb[0].mxu0
        %v3038 = vadd.f32 %v2989, %v3037
        %v3039 = vpop.f32.mrb[0].mxu0
        %3040 = vmatprep.mubr.bf16.mxu0 %v2160
        %3041 = vmatmul.mubr.bf16.gmra.mrb[0].mxu0 %v2152
        %v3042 = vpop.f32.mrb[0].mxu0
        %v3043 = vadd.f32 %v2994, %v3042
        %v3044 = vpop.f32.mrb[0].mxu0
        %v3045 = vpop.f32.mrb[0].mxu0
        %v3046 = vadd.f32 %v2997, %v3045
        %v3047 = vpop.f32.mrb[0].mxu0
        %3048 = vdwg.mxu0
        %v3049 = vmax.f32 %v3035, 0.0
        %v3050 = vmax.f32 %v3038, 0.0
        %v3051 = vmax.f32 %v3043, 0.0
        %v3052 = vmax.f32 %v3046, 0.0
        %vm3053 = vcmask 261120
        %3054 = vst.msk [vmem:[%s271] sm:$0xff] %vm3053, %v3049
        %3055 = vst.msk [vmem:[%s271 + $0x8] sm:$0xff] %vm3053, %v3050
        %3056 = vst.msk [vmem:[%s271 + $0x10] sm:$0xff] %vm3053, %v3051
        %3057 = vst.msk [vmem:[%s271 + $0x18] sm:$0xff] %vm3053, %v3052
        %s3058 = sand.u32 %s141, 1
        %s3059 = scalar_lea.sflag [#allocation5], %s3058
        %s3060 = sand.u32 %s141, 1
        %s3061 = smul.addr %s3060, 32
        %s3062 = scalar_lea.vmem [#allocation9], %s3061
        // Predicated region
        $region53: #{tpu_custom_call.1} parent=39 // pred_check
          %p3063 = pneg %p151
        $region54: #{tpu_custom_call.1} parent=39 // pred_check_branch
          %3065 = sbr.rel (%p3063) target = $region56
        $region55: #{tpu_custom_call.1} parent=39 // pred_region
          %s3067 = ssub.s32 512, 512
          %3068 = vsyncadd %s3059, %s3067
          %s3069 = smul.addr %s23, 4
          %s3070 = smul.addr %s3069, 128
          %s3071 = scalar_lea.hbm %s5, %s3070
          %s3072 = sshll.u32 %s3062, 4
          %s3073 = int_to_ptr.vmem [resolvable:$true] %s3072
          %3078 = dma.vmem_to_hbm [thread:$0]  %s3073, 512, %s3071, %s3059, 128, 128, 8
        $region56: #{tpu_custom_call.1} parent=39 // pred_fallthru
          _
      $region40: #{tpu_custom_call.1} parent=5 // pred_fallthru
        _
      %p3079 = scmp.le.s32.totalorder 2, %s18
      // Predicated region
      $region57: #{tpu_custom_call.1} parent=5 // pred_check
        %p3080 = pneg %p3079
      $region58: #{tpu_custom_call.1} parent=5 // pred_check_branch
        %3082 = sbr.rel (%p3080) target = $region60
      $region59: #{tpu_custom_call.1} parent=5 // pred_region
        %s3083 = ssub.s32 %s18, 2
        // Predicated region
        $region61: #{tpu_custom_call.1} parent=59 // pred_check
          %p3084 = pneg %p157
        $region62: #{tpu_custom_call.1} parent=59 // pred_check_branch
          %3086 = sbr.rel (%p3084) target = $region64
        $region63: #{tpu_custom_call.1} parent=59 // pred_region
          %s3087 = sand.u32 %s142, 1
          %s3088 = scalar_lea.sflag [#allocation5], %s3087
          %s3089 = sand.u32 %s142, 1
          %s3090 = smul.addr %s3089, 32
          %s3091 = scalar_lea.vmem [#allocation9], %s3090
          %3092 = dma.done %s3088, 512
        $region64: #{tpu_custom_call.1} parent=59 // pred_fallthru
          _
      $region60: #{tpu_custom_call.1} parent=5 // pred_fallthru
        _
    $region6: #{tpu_custom_call.1} parent=1 // loop_footer
      %s22 = sadd.s32 1, %s18
    $region7: #{tpu_custom_call.1} parent=1 // loop_footer_branch
      %17 = sbr.rel target = $region3
    $region8: #{tpu_custom_call.1} parent=1 // loop_exit
      _
    %3093 = vsyncpa [#allocation4], 1
    %s3094 = scalar_lea.sflag [#allocation4], 1
    %3095 = vsyncpa %s3094, 1
    %3096 = vsyncpa [#allocation7], 1
    %3097 = vsyncpa [#allocation5], 1
    %s3098 = scalar_lea.sflag [#allocation5], 1
    %3099 = vsyncpa %s3098, 1

</llo_original>
